<compile_context>
chip_gen: v5e
topology: v5e:2x2
jax: 0.10.0
libtpu: 0.0.40
codegen_flags: <defaults>
</compile_context>

<pallas_src>
import functools

import jax
import jax.numpy as jnp
from jax.experimental import pallas as pl
from jax.experimental.pallas import tpu as pltpu

_LANE = 128                         # TPU lane width: channel padding target
_VMEM_LIMIT = 48 * 1024 * 1024      # explicit cap w/ headroom (v7x: 64 MiB phys)
_ROW_TILE_BUDGET = 12 * 1024 * 1024 # per-step working-set budget for the 3x3 conv


def _round_up(x, m):
    return (x + m - 1) // m * m


# ----------------------------------------------------------------------------
# Kernel 1: 1x1 conv (channel matmul) + bias + SiLU (+ optional static scale)
# ----------------------------------------------------------------------------
def _pw_conv_silu_kernel(x_ref, w_ref, b_ref, o_ref, *, out_scale):
    # x_ref: (TM, Cin) bf16 ; w_ref: (Cin, Cout) bf16 ; b_ref: (1, Cout) f32
    x = x_ref[...].astype(w_ref.dtype)
    acc = jnp.dot(x, w_ref[...], preferred_element_type=jnp.float32)
    acc = acc + b_ref[...]
    act = acc * jax.nn.sigmoid(acc)                        # SiLU in f32
    if out_scale != 1.0:                                   # n == 0 path: 2 * cv1(x)
        act = act * out_scale
    o_ref[...] = act.astype(o_ref.dtype)


def pw_conv_silu(x2d, w, b, out_dtype=jnp.bfloat16, tm=1024, out_scale=1.0):
    """x2d: (M, Cin) with M = B*H*W; w: (Cin, Cout) bf16; b: (Cout,) f32."""
    M, cin = x2d.shape
    cout = w.shape[1]
    tm = min(tm, _round_up(M, 8))                          # big lane-dense row tiles
    kernel = functools.partial(_pw_conv_silu_kernel, out_scale=float(out_scale))
    return pl.pallas_call(
        kernel,
        out_shape=jax.ShapeDtypeStruct((M, cout), out_dtype),
        grid=(pl.cdiv(M, tm),),
        in_specs=[
            pl.BlockSpec((tm, cin), lambda i: (i, 0)),
            pl.BlockSpec((cin, cout), lambda i: (0, 0)),
            pl.BlockSpec((1, cout), lambda i: (0, 0)),
        ],
        out_specs=pl.BlockSpec((tm, cout), lambda i: (i, 0)),
        compiler_params=pltpu.CompilerParams(
            dimension_semantics=("parallel",),
            vmem_limit_bytes=_VMEM_LIMIT),
    )(x2d, w, b.reshape(1, cout))


# ----------------------------------------------------------------------------
# Kernel 2: 3x3 conv (pad 1, stride 1) + bias + SiLU (+ optional residual)
# Row-tiled NHWC; halo rows arrive as two extra 1-row blocks; image padding is
# realized in-kernel.  W shifts use pltpu.roll on the token-flattened slab.
# ----------------------------------------------------------------------------
def _conv3_impl(x_ref, top_ref, bot_ref, w_ref, b_ref, res_ref, o_ref):
    _, TH, W, C = x_ref.shape
    rt = pl.program_id(1)
    n_rt = pl.num_programs(1)

    # Assemble the (TH+2)-row halo slab in token form ((TH+2)*W, C).
    top = top_ref[0, 0]                                    # (W, C)
    bot = bot_ref[0, 0]
    top = jnp.where(rt == 0, jnp.zeros_like(top), top)         # image-top zero pad
    bot = jnp.where(rt == n_rt - 1, jnp.zeros_like(bot), bot)  # image-bottom zero pad
    main = x_ref[0].reshape(TH * W, C)                     # contiguous merge
    slab = jnp.concatenate([top, main, bot], axis=0)       # ((TH+2)*W, C)
    n_tok = (TH + 2) * W

    # Column index of every token: masks the wrapped column after a roll
    # (this is the left/right zero padding of the conv, done in-kernel).
    col = jax.lax.broadcasted_iota(jnp.int32, (TH + 2, W, C), 1).reshape(n_tok, C)

    acc = jnp.zeros((TH * W, C), jnp.float32)
    for dw in (-1, 0, 1):
        if dw == 0:
            s = slab
        else:
            # shifted[h, w] = slab[h, w + dw]; XLU roll, then zero the wrapped column.
            s = pltpu.roll(slab, shift=(-dw) % n_tok, axis=0)
            edge = 0 if dw == -1 else W - 1
            s = jnp.where(col == edge, jnp.zeros((), s.dtype), s)
        for dh in (-1, 0, 1):
            tap = 3 * (dh + 1) + (dw + 1)
            # dh shift = tile-aligned slice along the token (sublane) axis.
            rows = s[(dh + 1) * W:(dh + 1) * W + TH * W]
            acc = acc + jnp.dot(rows, w_ref[tap],
                                preferred_element_type=jnp.float32)

    acc = acc + b_ref[...]
    act = acc * jax.nn.sigmoid(acc)                        # SiLU in f32
    if res_ref is not None:                                # fused "+ y" (last conv only)
        act = act + res_ref[0].reshape(TH * W, C).astype(jnp.float32)
    o_ref[...] = act.reshape(1, TH, W, C).astype(o_ref.dtype)


def _conv3_kernel(x_ref, top_ref, bot_ref, w_ref, b_ref, o_ref):
    _conv3_impl(x_ref, top_ref, bot_ref, w_ref, b_ref, None, o_ref)


def _conv3_res_kernel(x_ref, top_ref, bot_ref, w_ref, b_ref, res_ref, o_ref):
    _conv3_impl(x_ref, top_ref, bot_ref, w_ref, b_ref, res_ref, o_ref)


def _pick_row_tile(H, W, C, itemsize, budget=_ROW_TILE_BUDGET):
    """Largest divisor of H whose per-step working set fits `budget`,
    preferring >= 2 row tiles (pipeline overlap + megacore sharding)."""
    def cost(th):
        blk = th * W * C * itemsize                  # one streamed activation block
        halo = 2 * W * C * itemsize
        wts = 9 * C * C * itemsize
        slab = 2 * (th + 2) * W * C * itemsize       # halo slab + one rolled copy
        acc = th * W * C * 4                         # f32 accumulator
        return 2 * (3 * blk + halo) + 2 * wts + slab + acc
    divs = [d for d in range(1, H + 1) if H % d == 0]
    fitting = [d for d in divs if cost(d) <= budget] or [1]
    best = max(fitting)
    if best == H and H > 1:
        smaller = [d for d in fitting if d <= H // 2]
        if smaller:
            best = max(smaller)
    return best


def conv3_silu(x, w_hwio, b, res=None):
    """3x3 conv (stride 1, pad 1) + bias + SiLU (+ optional residual), NHWC."""
    B, H, W, C = x.shape
    TH = _pick_row_tile(H, W, C, x.dtype.itemsize)
    n_rt = H // TH
    w9 = w_hwio.reshape(9, C, C)                     # tap t = 3*kh + kw -> (Cin, Cout)

    main_spec = pl.BlockSpec((1, TH, W, C), lambda bi, ri: (bi, ri, 0, 0))
    # Halo rows: single-row blocks at clamped row indices; the clamped copies
    # fetched at the image top/bottom are zeroed in-kernel (conv zero padding).
    top_spec = pl.BlockSpec(
        (1, 1, W, C), lambda bi, ri: (bi, jnp.maximum(ri * TH - 1, 0), 0, 0))
    bot_spec = pl.BlockSpec(
        (1, 1, W, C), lambda bi, ri: (bi, jnp.minimum((ri + 1) * TH, H - 1), 0, 0))

    in_specs = [main_spec, top_spec, bot_spec,
                pl.BlockSpec((9, C, C), lambda bi, ri: (0, 0, 0)),
                pl.BlockSpec((1, C), lambda bi, ri: (0, 0))]
    args = [x, x, x, w9, b.reshape(1, C)]
    kernel = _conv3_kernel
    if res is not None:
        in_specs.append(pl.BlockSpec((1, TH, W, C), lambda bi, ri: (bi, ri, 0, 0)))
        args.append(res)
        kernel = _conv3_res_kernel

    return pl.pallas_call(
        kernel,
        out_shape=jax.ShapeDtypeStruct((B, H, W, C), x.dtype),
        grid=(B, n_rt),
        in_specs=in_specs,
        out_specs=pl.BlockSpec((1, TH, W, C), lambda bi, ri: (bi, ri, 0, 0)),
        compiler_params=pltpu.CompilerParams(
            dimension_semantics=("parallel", "parallel"),
            vmem_limit_bytes=_VMEM_LIMIT),
    )(*args)


# ----------------------------------------------------------------------------
# Module: parameters + forward
# ----------------------------------------------------------------------------
def _fold_bn(w_hwio, gamma, beta, mean, var, eps=1e-3):
    """Fold eval-mode BatchNorm into conv weights (HWIO, out-channel last)."""
    scale = gamma / jnp.sqrt(var + eps)
    return w_hwio * scale, beta - mean * scale


def _make_conv_params(key, k, cin, cout):
    kw, kg, kb, km, kv = jax.random.split(key, 5)
    w = 0.1 * jax.random.normal(kw, (k, k, cin, cout), jnp.float32)
    gamma = 1.0 + 0.1 * jax.random.normal(kg, (cout,), jnp.float32)
    beta = 0.1 * jax.random.normal(kb, (cout,), jnp.float32)
    mean = 0.1 * jax.random.normal(km, (cout,), jnp.float32)
    var = 0.5 + jnp.abs(jax.random.normal(kv, (cout,), jnp.float32))
    return _fold_bn(w, gamma, beta, mean, var)


class C1Pallas:
    """CSP Bottleneck with 1 convolution (Pallas/TPU, eval-mode BN folded)."""

    def __init__(self, c1, c2, n=1, key=None):
        if key is None:
            key = jax.random.PRNGKey(42)
        self.c1, self.c2 = c1, c2
        self.c2p = _round_up(c2, _LANE)              # lane-dense channel padding
        pad = self.c2p - c2
        keys = jax.random.split(key, n + 1)

        w1, b1 = _make_conv_params(keys[0], 1, c1, c2)      # (1,1,c1,c2), (c2,)
        self.ref_w1 = w1.reshape(c1, c2)                    # f32, unpadded (for ref)
        self.ref_b1 = b1
        self.w1 = jnp.pad(self.ref_w1, ((0, 0), (0, pad))).astype(jnp.bfloat16)
        self.b1 = jnp.pad(b1, (0, pad))                     # f32 bias

        self.ref_m, self.m = [], []
        for i in range(n):
            w, b = _make_conv_params(keys[1 + i], 3, c2, c2)
            self.ref_m.append((w, b))
            wp = jnp.pad(w, ((0, 0), (0, 0), (0, pad), (0, pad))).astype(jnp.bfloat16)
            self.m.append((wp, jnp.pad(b, (0, pad))))

    def __call__(self, x_nchw):
        # NCHW -> NHWC; the bf16 cast fuses into the same XLA transpose pass and
        # halves HBM traffic into the 1x1-conv kernel (matmul was bf16 anyway).
        x = jnp.transpose(x_nchw, (0, 2, 3, 1)).astype(jnp.bfloat16)
        B, H, W, _ = x.shape
        x2d = x.reshape(B * H * W, self.c1)

        if not self.m:                                      # Sequential() == identity
            # forward = cv1(x) + cv1(x): fold the *2 into the 1x1 kernel (no y round trip)
            z2d = pw_conv_silu(x2d, self.w1, self.b1, out_scale=2.0)
            z = z2d.reshape(B, H, W, self.c2p)
        else:
            # cv1: 1x1 conv == channel matmul; padded output channels stay exactly 0.
            y2d = pw_conv_silu(x2d, self.w1, self.b1)
            y = y2d.reshape(B, H, W, self.c2p)              # bf16 activations
            # TODO(synk): for n >= 2 the intermediate z still makes one HBM round
            # trip per layer; a fused multi-layer pallas_call (z kept in VMEM,
            # growing halo) would remove it.
            z = y
            for i, (w, b) in enumerate(self.m):
                res = y if i == len(self.m) - 1 else None   # fuse "+ y" into last conv
                z = conv3_silu(z, w, b, res=res)
        out = z[..., :self.c2].astype(jnp.float32)
        return jnp.transpose(out, (0, 3, 1, 2))             # NHWC -> NCHW


# ----------------------------------------------------------------------------
# Pure-JAX f32 reference (same folded params) for correctness checking
# ----------------------------------------------------------------------------
def _ref_forward(mod, x_nchw):
    x = jnp.transpose(x_nchw, (0, 2, 3, 1))

    def conv(z, w_hwio, b, pad):
        out = jax.lax.conv_general_dilated(
            z, w_hwio, (1, 1), pad,
            dimension_numbers=("NHWC", "HWIO", "NHWC"))
        out = out + b
        return out * jax.nn.sigmoid(out)

    c1, c2 = mod.ref_w1.shape
    y = conv(x, mod.ref_w1.reshape(1, 1, c1, c2), mod.ref_b1, "VALID")
    z = y
    for (w, b) in mod.ref_m:
        z = conv(z, w, b, "SAME")
    return jnp.transpose(z + y, (0, 3, 1, 2))


if __name__ == "__main__":
    B, c1, c2, H, W, n = 2, 4, 8, 16, 16, 2
    x = jax.random.normal(jax.random.PRNGKey(0), (B, c1, H, W), jnp.float32)

    mod = C1Pallas(c1, c2, n=n, key=jax.random.PRNGKey(42))
    out = jax.block_until_ready(mod(x))
    assert out.shape == (B, c2, H, W), out.shape
    ref = _ref_forward(mod, x)
    err = float(jnp.max(jnp.abs(out - ref)))
    assert jnp.allclose(out, ref, atol=3e-2, rtol=3e-2), err

    # n = 0 edge case: Sequential() is identity, forward = cv1(x) + cv1(x).
    mod0 = C1Pallas(c1, c2, n=0, key=jax.random.PRNGKey(7))
    out0 = jax.block_until_ready(mod0(x))
    ref0 = _ref_forward(mod0, x)
    assert jnp.allclose(out0, ref0, atol=3e-2, rtol=3e-2)

    print("KERNEL_OK")
</pallas_src>

<mosaic_0001>
module attributes {stable_mosaic.version = 11 : i64} {
  func.func @_pw_conv_silu_kernel(%arg0: i32, %arg1: memref<512x4xbf16, #tpu.memory_space<vmem>>, %arg2: memref<4x128xbf16, #tpu.memory_space<vmem>>, %arg3: memref<1x128xf32, #tpu.memory_space<vmem>>, %arg4: memref<512x128xbf16, #tpu.memory_space<vmem>>) attributes {dimension_semantics = [#tpu.dimension_semantics<parallel>], iteration_bounds = array<i64: 1>, scalar_prefetch = 0 : i64, scratch_operands = 0 : i64, tpu.core_type = #tpu.core_type<tc>, window_params = [{transform_indices = @transform_0, window_bounds = array<i64: 512, 4>}, {pipeline_mode = #tpu.pipeline_mode<synchronous>, transform_indices = @transform_1, window_bounds = array<i64: 4, 128>}, {pipeline_mode = #tpu.pipeline_mode<synchronous>, transform_indices = @transform_2, window_bounds = array<i64: 1, 128>}, {transform_indices = @transform_3, window_bounds = array<i64: 512, 128>}]} {
    %c0 = arith.constant 0 : index
    %c0_0 = arith.constant 0 : index
    %0 = vector.load %arg1[%c0, %c0_0] : memref<512x4xbf16, #tpu.memory_space<vmem>>, vector<512x4xbf16>
    %c0_1 = arith.constant 0 : index
    %c0_2 = arith.constant 0 : index
    %1 = vector.load %arg2[%c0_1, %c0_2] : memref<4x128xbf16, #tpu.memory_space<vmem>>, vector<4x128xbf16>
    %cst = arith.constant dense<0.000000e+00> : vector<512x128xf32>
    %2 = tpu.matmul %0, %1, %cst {dimension_numbers = #tpu.dot_dimension_numbers<[1], [0], [0], [1], [0, 0, 1, 1], [], []>} : vector<512x4xbf16>, vector<4x128xbf16>, vector<512x128xf32> -> vector<512x128xf32>
    %c0_3 = arith.constant 0 : index
    %c0_4 = arith.constant 0 : index
    %3 = vector.load %arg3[%c0_3, %c0_4] : memref<1x128xf32, #tpu.memory_space<vmem>>, vector<1x128xf32>
    %4 = vector.broadcast %3 : vector<1x128xf32> to vector<512x128xf32>
    %5 = arith.addf %2, %4 : vector<512x128xf32>
    %6 = arith.negf %5 : vector<512x128xf32>
    %7 = math.exp %6 : vector<512x128xf32>
    %cst_5 = arith.constant 1.000000e+00 : f32
    %8 = vector.broadcast %cst_5 : f32 to vector<512x128xf32>
    %9 = arith.addf %8, %7 : vector<512x128xf32>
    %10 = arith.divf %8, %9 : vector<512x128xf32>
    %11 = arith.mulf %5, %10 : vector<512x128xf32>
    %12 = arith.truncf %11 : vector<512x128xf32> to vector<512x128xbf16>
    %c0_6 = arith.constant 0 : index
    %c0_7 = arith.constant 0 : index
    %13 = vector.load %arg4[%c0_6, %c0_7] : memref<512x128xbf16, #tpu.memory_space<vmem>>, vector<512x128xbf16>
    tpu.vector_store %arg4[%c0_6, %c0_7], %12 {strides = array<i32>} : memref<512x128xbf16, #tpu.memory_space<vmem>>, vector<512x128xbf16>,
    return
  }
  func.func @transform_0(%arg0: i32) -> (i32, i32) {
    %c0_i32 = arith.constant 0 : i32
    %c0_i32_0 = arith.constant 0 : i32
    return %arg0, %c0_i32 : i32, i32
  }
  func.func @transform_1(%arg0: i32) -> (i32, i32) {
    %c0_i32 = arith.constant 0 : i32
    %c0_i32_0 = arith.constant 0 : i32
    %c0_i32_1 = arith.constant 0 : i32
    return %c0_i32, %c0_i32_0 : i32, i32
  }
  func.func @transform_2(%arg0: i32) -> (i32, i32) {
    %c0_i32 = arith.constant 0 : i32
    %c0_i32_0 = arith.constant 0 : i32
    %c0_i32_1 = arith.constant 0 : i32
    return %c0_i32, %c0_i32_0 : i32, i32
  }
  func.func @transform_3(%arg0: i32) -> (i32, i32) {
    %c0_i32 = arith.constant 0 : i32
    %c0_i32_0 = arith.constant 0 : i32
    return %arg0, %c0_i32 : i32, i32
  }
}

</mosaic_0001>

<llo_original>
// kernel: tpu_custom_call.1
$region0: #{tpu_custom_call.1}
  #allocation0 [shape = 'u32[]', space=smem, size = 0x4, offset = 0x4, fixed_abs, tag = 'smem constant byte address 0x4 - core index']
  #allocation1 [shape = 'u32[72,128]{1,0:T(1,128)}', space=vmem, size = 0x9000, scoped, tag = 'internal scratch']
  %s0 = inlined_call_operand.vmem [shape: bf16[512,4], index: 0, kind: input, shape index: {}]
  %s1 = inlined_call_operand.vmem [shape: bf16[4,128], index: 1, kind: input, shape index: {}]
  %s2 = inlined_call_operand.vmem [shape: f32[1,128], index: 2, kind: input, shape index: {}]
  %s3 = inlined_call_operand.hbm [shape: bf16[512,128], index: 3, kind: output, shape index: {}]
  %s4 = sld [smem:[#allocation0]]
  $region22: #{tpu_custom_call.1} parent=0
    _
  %s6 = ssub.s32 1, %s4
  %s7 = scalar_select 0, %s6, %s4
  $region1: #{tpu_custom_call.1} parent=0
    #allocation2 [shape = 'u8[131072]{0}', space=vmem, size = 0x20000, scoped, tag = 'output window, operand 0, single buffered']
    #allocation3 [shape = 's32[1]{0}', space=sflag, size = 0x4, scoped, tag = 'scoped memory for tpu_custom_call.1']
    %8 = vsyncpa [#allocation3], 0
    // Predicated region
    $region2: #{tpu_custom_call.1} parent=1 // pred_check
      _
    $region3: #{tpu_custom_call.1} parent=1 // pred_check_branch
      %10 = sbr.rel (0) target = $region5
    $region4: #{tpu_custom_call.1} parent=1 // pred_region
      _
    $region5: #{tpu_custom_call.1} parent=1 // pred_fallthru
      _
    // Predicated region
    $region6: #{tpu_custom_call.1} parent=1 // pred_check
      _
    $region7: #{tpu_custom_call.1} parent=1 // pred_check_branch
      %12 = sbr.rel (0) target = $region9
    $region8: #{tpu_custom_call.1} parent=1 // pred_region
      _
    $region9: #{tpu_custom_call.1} parent=1 // pred_fallthru
      _
    // Predicated region
    $region10: #{tpu_custom_call.1} parent=1 // pred_check
      _
    $region11: #{tpu_custom_call.1} parent=1 // pred_check_branch
      %14 = sbr.rel (0) target = $region13
    $region12: #{tpu_custom_call.1} parent=1 // pred_region
      _
    $region13: #{tpu_custom_call.1} parent=1 // pred_fallthru
      _
    %v16 = vld [vmem:[%s0] sm:$0xf]
    %v17 = vld [vmem:[%s0 + $0x4] sm:$0xf]
    %v18 = vld [vmem:[%s0 + $0x8] sm:$0xf]
    %v19 = vld [vmem:[%s0 + $0xc] sm:$0xf]
    %v20 = vld [vmem:[%s0 + $0x10] sm:$0xf]
    %v21 = vld [vmem:[%s0 + $0x14] sm:$0xf]
    %v22 = vld [vmem:[%s0 + $0x18] sm:$0xf]
    %v23 = vld [vmem:[%s0 + $0x1c] sm:$0xf]
    %v24 = vld [vmem:[%s0 + $0x20] sm:$0xf]
    %v25 = vld [vmem:[%s0 + $0x24] sm:$0xf]
    %v26 = vld [vmem:[%s0 + $0x28] sm:$0xf]
    %v27 = vld [vmem:[%s0 + $0x2c] sm:$0xf]
    %v28 = vld [vmem:[%s0 + $0x30] sm:$0xf]
    %v29 = vld [vmem:[%s0 + $0x34] sm:$0xf]
    %v30 = vld [vmem:[%s0 + $0x38] sm:$0xf]
    %v31 = vld [vmem:[%s0 + $0x3c] sm:$0xf]
    %v32 = vld [vmem:[%s0 + $0x40] sm:$0xf]
    %v33 = vld [vmem:[%s0 + $0x44] sm:$0xf]
    %v34 = vld [vmem:[%s0 + $0x48] sm:$0xf]
    %v35 = vld [vmem:[%s0 + $0x4c] sm:$0xf]
    %v36 = vld [vmem:[%s0 + $0x50] sm:$0xf]
    %v37 = vld [vmem:[%s0 + $0x54] sm:$0xf]
    %v38 = vld [vmem:[%s0 + $0x58] sm:$0xf]
    %v39 = vld [vmem:[%s0 + $0x5c] sm:$0xf]
    %v40 = vld [vmem:[%s0 + $0x60] sm:$0xf]
    %v41 = vld [vmem:[%s0 + $0x64] sm:$0xf]
    %v42 = vld [vmem:[%s0 + $0x68] sm:$0xf]
    %v43 = vld [vmem:[%s0 + $0x6c] sm:$0xf]
    %v44 = vld [vmem:[%s0 + $0x70] sm:$0xf]
    %v45 = vld [vmem:[%s0 + $0x74] sm:$0xf]
    %v46 = vld [vmem:[%s0 + $0x78] sm:$0xf]
    %v47 = vld [vmem:[%s0 + $0x7c] sm:$0xf]
    %v48 = vld [vmem:[%s0 + $0x80] sm:$0xf]
    %v49 = vld [vmem:[%s0 + $0x84] sm:$0xf]
    %v50 = vld [vmem:[%s0 + $0x88] sm:$0xf]
    %v51 = vld [vmem:[%s0 + $0x8c] sm:$0xf]
    %v52 = vld [vmem:[%s0 + $0x90] sm:$0xf]
    %v53 = vld [vmem:[%s0 + $0x94] sm:$0xf]
    %v54 = vld [vmem:[%s0 + $0x98] sm:$0xf]
    %v55 = vld [vmem:[%s0 + $0x9c] sm:$0xf]
    %v56 = vld [vmem:[%s0 + $0xa0] sm:$0xf]
    %v57 = vld [vmem:[%s0 + $0xa4] sm:$0xf]
    %v58 = vld [vmem:[%s0 + $0xa8] sm:$0xf]
    %v59 = vld [vmem:[%s0 + $0xac] sm:$0xf]
    %v60 = vld [vmem:[%s0 + $0xb0] sm:$0xf]
    %v61 = vld [vmem:[%s0 + $0xb4] sm:$0xf]
    %v62 = vld [vmem:[%s0 + $0xb8] sm:$0xf]
    %v63 = vld [vmem:[%s0 + $0xbc] sm:$0xf]
    %v64 = vld [vmem:[%s0 + $0xc0] sm:$0xf]
    %v65 = vld [vmem:[%s0 + $0xc4] sm:$0xf]
    %v66 = vld [vmem:[%s0 + $0xc8] sm:$0xf]
    %v67 = vld [vmem:[%s0 + $0xcc] sm:$0xf]
    %v68 = vld [vmem:[%s0 + $0xd0] sm:$0xf]
    %v69 = vld [vmem:[%s0 + $0xd4] sm:$0xf]
    %v70 = vld [vmem:[%s0 + $0xd8] sm:$0xf]
    %v71 = vld [vmem:[%s0 + $0xdc] sm:$0xf]
    %v72 = vld [vmem:[%s0 + $0xe0] sm:$0xf]
    %v73 = vld [vmem:[%s0 + $0xe4] sm:$0xf]
    %v74 = vld [vmem:[%s0 + $0xe8] sm:$0xf]
    %v75 = vld [vmem:[%s0 + $0xec] sm:$0xf]
    %v76 = vld [vmem:[%s0 + $0xf0] sm:$0xf]
    %v77 = vld [vmem:[%s0 + $0xf4] sm:$0xf]
    %v78 = vld [vmem:[%s0 + $0xf8] sm:$0xf]
    %v79 = vld [vmem:[%s0 + $0xfc] sm:$0xf]
    %v80 = vld [vmem:[%s1] sm:$0x3]
    %v81 = vld [vmem:[%s2] sm:$0x1]
    %v83 = vperm.slane %v81, 0
    %v149 = vunpack.c.l.b16 %v16
    %v150 = vunpack.c.l.b16 %v17
    %v151 = vunpack.c.l.b16 %v18
    %v152 = vunpack.c.l.b16 %v19
    %v153 = vunpack.c.l.b16 %v20
    %v154 = vunpack.c.l.b16 %v21
    %v155 = vunpack.c.l.b16 %v22
    %v156 = vunpack.c.l.b16 %v23
    %v157 = vunpack.c.l.b16 %v24
    %v158 = vunpack.c.l.b16 %v25
    %v159 = vunpack.c.l.b16 %v26
    %v160 = vunpack.c.l.b16 %v27
    %v161 = vunpack.c.l.b16 %v28
    %v162 = vunpack.c.l.b16 %v29
    %v163 = vunpack.c.l.b16 %v30
    %v164 = vunpack.c.l.b16 %v31
    %v165 = vunpack.c.l.b16 %v32
    %v166 = vunpack.c.l.b16 %v33
    %v167 = vunpack.c.l.b16 %v34
    %v168 = vunpack.c.l.b16 %v35
    %v169 = vunpack.c.l.b16 %v36
    %v170 = vunpack.c.l.b16 %v37
    %v171 = vunpack.c.l.b16 %v38
    %v172 = vunpack.c.l.b16 %v39
    %v173 = vunpack.c.l.b16 %v40
    %v174 = vunpack.c.l.b16 %v41
    %v175 = vunpack.c.l.b16 %v42
    %v176 = vunpack.c.l.b16 %v43
    %v177 = vunpack.c.l.b16 %v44
    %v178 = vunpack.c.l.b16 %v45
    %v179 = vunpack.c.l.b16 %v46
    %v180 = vunpack.c.l.b16 %v47
    %v181 = vunpack.c.l.b16 %v48
    %v182 = vunpack.c.l.b16 %v49
    %v183 = vunpack.c.l.b16 %v50
    %v184 = vunpack.c.l.b16 %v51
    %v185 = vunpack.c.l.b16 %v52
    %v186 = vunpack.c.l.b16 %v53
    %v187 = vunpack.c.l.b16 %v54
    %v188 = vunpack.c.l.b16 %v55
    %v189 = vunpack.c.l.b16 %v56
    %v190 = vunpack.c.l.b16 %v57
    %v191 = vunpack.c.l.b16 %v58
    %v192 = vunpack.c.l.b16 %v59
    %v193 = vunpack.c.l.b16 %v60
    %v194 = vunpack.c.l.b16 %v61
    %v195 = vunpack.c.l.b16 %v62
    %v196 = vunpack.c.l.b16 %v63
    %v197 = vunpack.c.l.b16 %v64
    %v198 = vunpack.c.l.b16 %v65
    %v199 = vunpack.c.l.b16 %v66
    %v200 = vunpack.c.l.b16 %v67
    %v201 = vunpack.c.l.b16 %v68
    %v202 = vunpack.c.l.b16 %v69
    %v203 = vunpack.c.l.b16 %v70
    %v204 = vunpack.c.l.b16 %v71
    %v205 = vunpack.c.l.b16 %v72
    %v206 = vunpack.c.l.b16 %v73
    %v207 = vunpack.c.l.b16 %v74
    %v208 = vunpack.c.l.b16 %v75
    %v209 = vunpack.c.l.b16 %v76
    %v210 = vunpack.c.l.b16 %v77
    %v211 = vunpack.c.l.b16 %v78
    %v212 = vunpack.c.l.b16 %v79
    %v213 = vpack.c.b16 %v150, %v149
    %v214 = vpack.c.b16 %v152, %v151
    %v215 = vpack.c.b16 %v154, %v153
    %v216 = vpack.c.b16 %v156, %v155
    %v217 = vpack.c.b16 %v158, %v157
    %v218 = vpack.c.b16 %v160, %v159
    %v219 = vpack.c.b16 %v162, %v161
    %v220 = vpack.c.b16 %v164, %v163
    %v221 = vpack.c.b16 %v166, %v165
    %v222 = vpack.c.b16 %v168, %v167
    %v223 = vpack.c.b16 %v170, %v169
    %v224 = vpack.c.b16 %v172, %v171
    %v225 = vpack.c.b16 %v174, %v173
    %v226 = vpack.c.b16 %v176, %v175
    %v227 = vpack.c.b16 %v178, %v177
    %v228 = vpack.c.b16 %v180, %v179
    %v229 = vpack.c.b16 %v182, %v181
    %v230 = vpack.c.b16 %v184, %v183
    %v231 = vpack.c.b16 %v186, %v185
    %v232 = vpack.c.b16 %v188, %v187
    %v233 = vpack.c.b16 %v190, %v189
    %v234 = vpack.c.b16 %v192, %v191
    %v235 = vpack.c.b16 %v194, %v193
    %v236 = vpack.c.b16 %v196, %v195
    %v237 = vpack.c.b16 %v198, %v197
    %v238 = vpack.c.b16 %v200, %v199
    %v239 = vpack.c.b16 %v202, %v201
    %v240 = vpack.c.b16 %v204, %v203
    %v241 = vpack.c.b16 %v206, %v205
    %v242 = vpack.c.b16 %v208, %v207
    %v243 = vpack.c.b16 %v210, %v209
    %v244 = vpack.c.b16 %v212, %v211
    %vm245 = vcmask 31744
    %v247 = vsel %vm245, %v213, 0
    %v250 = vsel %vm245, %v214, 0
    %v253 = vsel %vm245, %v215, 0
    %v256 = vsel %vm245, %v216, 0
    %v259 = vsel %vm245, %v217, 0
    %v262 = vsel %vm245, %v218, 0
    %v265 = vsel %vm245, %v219, 0
    %v268 = vsel %vm245, %v220, 0
    %v271 = vsel %vm245, %v221, 0
    %v274 = vsel %vm245, %v222, 0
    %v277 = vsel %vm245, %v223, 0
    %v280 = vsel %vm245, %v224, 0
    %v283 = vsel %vm245, %v225, 0
    %v286 = vsel %vm245, %v226, 0
    %v289 = vsel %vm245, %v227, 0
    %v292 = vsel %vm245, %v228, 0
    %v295 = vsel %vm245, %v229, 0
    %v298 = vsel %vm245, %v230, 0
    %v301 = vsel %vm245, %v231, 0
    %v304 = vsel %vm245, %v232, 0
    %v307 = vsel %vm245, %v233, 0
    %v310 = vsel %vm245, %v234, 0
    %v313 = vsel %vm245, %v235, 0
    %v316 = vsel %vm245, %v236, 0
    %v319 = vsel %vm245, %v237, 0
    %v322 = vsel %vm245, %v238, 0
    %v325 = vsel %vm245, %v239, 0
    %v328 = vsel %vm245, %v240, 0
    %v331 = vsel %vm245, %v241, 0
    %v334 = vsel %vm245, %v242, 0
    %v337 = vsel %vm245, %v243, 0
    %v340 = vsel %vm245, %v244, 0
    %vm342 = vcmask 1041408
    %v344 = vsel %vm342, %v80, 0
    %346 = vmatpush.bf16.msra.mxu0 0
    %347 = vmatpush.bf16.msra.mxu0 0
    %348 = vmatpush.bf16.msra.mxu0 0
    %349 = vmatpush.bf16.msra.mxu0 0
    %350 = vmatpush.bf16.msra.mxu0 0
    %351 = vmatpush.bf16.msra.mxu0 0
    %352 = vmatpush.bf16.msra.mxu0 0
    %353 = vmatpush.bf16.msra.mxu0 %v344
    %354 = vmatmul.bf16.gmra.mxu0 %v247
    %v355 = vpop.f32.mrf.mxu0
    %v356 = vadd.f32 %v83, %v355
    %v357 = vpop.f32.mrf.mxu0
    %v358 = vadd.f32 %v83, %v357
    %359 = vmatmul.bf16.gmra.mxu0 %v250
    %v360 = vpop.f32.mrf.mxu0
    %v361 = vadd.f32 %v83, %v360
    %v362 = vpop.f32.mrf.mxu0
    %v363 = vadd.f32 %v83, %v362
    %364 = vmatmul.bf16.gmra.mxu0 %v253
    %v365 = vpop.f32.mrf.mxu0
    %v366 = vadd.f32 %v83, %v365
    %v367 = vpop.f32.mrf.mxu0
    %v368 = vadd.f32 %v83, %v367
    %369 = vmatmul.bf16.gmra.mxu0 %v256
    %v370 = vpop.f32.mrf.mxu0
    %v371 = vadd.f32 %v83, %v370
    %v372 = vpop.f32.mrf.mxu0
    %v373 = vadd.f32 %v83, %v372
    %374 = vmatmul.bf16.gmra.mxu0 %v259
    %v375 = vpop.f32.mrf.mxu0
    %v376 = vadd.f32 %v83, %v375
    %v377 = vpop.f32.mrf.mxu0
    %v378 = vadd.f32 %v83, %v377
    %379 = vmatmul.bf16.gmra.mxu0 %v262
    %v380 = vpop.f32.mrf.mxu0
    %v381 = vadd.f32 %v83, %v380
    %v382 = vpop.f32.mrf.mxu0
    %v383 = vadd.f32 %v83, %v382
    %384 = vmatmul.bf16.gmra.mxu0 %v265
    %v385 = vpop.f32.mrf.mxu0
    %v386 = vadd.f32 %v83, %v385
    %v387 = vpop.f32.mrf.mxu0
    %v388 = vadd.f32 %v83, %v387
    %389 = vmatmul.bf16.gmra.mxu0 %v268
    %v390 = vpop.f32.mrf.mxu0
    %v391 = vadd.f32 %v83, %v390
    %v392 = vpop.f32.mrf.mxu0
    %v393 = vadd.f32 %v83, %v392
    %394 = vmatmul.bf16.gmra.mxu0 %v271
    %v395 = vpop.f32.mrf.mxu0
    %v396 = vadd.f32 %v83, %v395
    %v397 = vpop.f32.mrf.mxu0
    %v398 = vadd.f32 %v83, %v397
    %399 = vmatmul.bf16.gmra.mxu0 %v274
    %v400 = vpop.f32.mrf.mxu0
    %v401 = vadd.f32 %v83, %v400
    %v402 = vpop.f32.mrf.mxu0
    %v403 = vadd.f32 %v83, %v402
    %404 = vmatmul.bf16.gmra.mxu0 %v277
    %v405 = vpop.f32.mrf.mxu0
    %v406 = vadd.f32 %v83, %v405
    %v407 = vpop.f32.mrf.mxu0
    %v408 = vadd.f32 %v83, %v407
    %409 = vmatmul.bf16.gmra.mxu0 %v280
    %v410 = vpop.f32.mrf.mxu0
    %v411 = vadd.f32 %v83, %v410
    %v412 = vpop.f32.mrf.mxu0
    %v413 = vadd.f32 %v83, %v412
    %414 = vmatmul.bf16.gmra.mxu0 %v283
    %v415 = vpop.f32.mrf.mxu0
    %v416 = vadd.f32 %v83, %v415
    %v417 = vpop.f32.mrf.mxu0
    %v418 = vadd.f32 %v83, %v417
    %419 = vmatmul.bf16.gmra.mxu0 %v286
    %v420 = vpop.f32.mrf.mxu0
    %v421 = vadd.f32 %v83, %v420
    %v422 = vpop.f32.mrf.mxu0
    %v423 = vadd.f32 %v83, %v422
    %424 = vmatmul.bf16.gmra.mxu0 %v289
    %v425 = vpop.f32.mrf.mxu0
    %v426 = vadd.f32 %v83, %v425
    %v427 = vpop.f32.mrf.mxu0
    %v428 = vadd.f32 %v83, %v427
    %429 = vmatmul.bf16.gmra.mxu0 %v292
    %v430 = vpop.f32.mrf.mxu0
    %v431 = vadd.f32 %v83, %v430
    %v432 = vpop.f32.mrf.mxu0
    %v433 = vadd.f32 %v83, %v432
    %434 = vmatmul.bf16.gmra.mxu0 %v295
    %v435 = vpop.f32.mrf.mxu0
    %v436 = vadd.f32 %v83, %v435
    %v437 = vpop.f32.mrf.mxu0
    %v438 = vadd.f32 %v83, %v437
    %439 = vmatmul.bf16.gmra.mxu0 %v298
    %v440 = vpop.f32.mrf.mxu0
    %v441 = vadd.f32 %v83, %v440
    %v442 = vpop.f32.mrf.mxu0
    %v443 = vadd.f32 %v83, %v442
    %444 = vmatmul.bf16.gmra.mxu0 %v301
    %v445 = vpop.f32.mrf.mxu0
    %v446 = vadd.f32 %v83, %v445
    %v447 = vpop.f32.mrf.mxu0
    %v448 = vadd.f32 %v83, %v447
    %449 = vmatmul.bf16.gmra.mxu0 %v304
    %v450 = vpop.f32.mrf.mxu0
    %v451 = vadd.f32 %v83, %v450
    %v452 = vpop.f32.mrf.mxu0
    %v453 = vadd.f32 %v83, %v452
    %454 = vmatmul.bf16.gmra.mxu0 %v307
    %v455 = vpop.f32.mrf.mxu0
    %v456 = vadd.f32 %v83, %v455
    %v457 = vpop.f32.mrf.mxu0
    %v458 = vadd.f32 %v83, %v457
    %459 = vmatmul.bf16.gmra.mxu0 %v310
    %v460 = vpop.f32.mrf.mxu0
    %v461 = vadd.f32 %v83, %v460
    %v462 = vpop.f32.mrf.mxu0
    %v463 = vadd.f32 %v83, %v462
    %464 = vmatmul.bf16.gmra.mxu0 %v313
    %v465 = vpop.f32.mrf.mxu0
    %v466 = vadd.f32 %v83, %v465
    %v467 = vpop.f32.mrf.mxu0
    %v468 = vadd.f32 %v83, %v467
    %469 = vmatmul.bf16.gmra.mxu0 %v316
    %v470 = vpop.f32.mrf.mxu0
    %v471 = vadd.f32 %v83, %v470
    %v472 = vpop.f32.mrf.mxu0
    %v473 = vadd.f32 %v83, %v472
    %474 = vmatmul.bf16.gmra.mxu0 %v319
    %v475 = vpop.f32.mrf.mxu0
    %v476 = vadd.f32 %v83, %v475
    %v477 = vpop.f32.mrf.mxu0
    %v478 = vadd.f32 %v83, %v477
    %479 = vmatmul.bf16.gmra.mxu0 %v322
    %v480 = vpop.f32.mrf.mxu0
    %v481 = vadd.f32 %v83, %v480
    %v482 = vpop.f32.mrf.mxu0
    %v483 = vadd.f32 %v83, %v482
    %484 = vmatmul.bf16.gmra.mxu0 %v325
    %v485 = vpop.f32.mrf.mxu0
    %v486 = vadd.f32 %v83, %v485
    %v487 = vpop.f32.mrf.mxu0
    %v488 = vadd.f32 %v83, %v487
    %489 = vmatmul.bf16.gmra.mxu0 %v328
    %v490 = vpop.f32.mrf.mxu0
    %v491 = vadd.f32 %v83, %v490
    %v492 = vpop.f32.mrf.mxu0
    %v493 = vadd.f32 %v83, %v492
    %494 = vmatmul.bf16.gmra.mxu0 %v331
    %v495 = vpop.f32.mrf.mxu0
    %v496 = vadd.f32 %v83, %v495
    %v497 = vpop.f32.mrf.mxu0
    %v498 = vadd.f32 %v83, %v497
    %499 = vmatmul.bf16.gmra.mxu0 %v334
    %v500 = vpop.f32.mrf.mxu0
    %v501 = vadd.f32 %v83, %v500
    %v502 = vpop.f32.mrf.mxu0
    %v503 = vadd.f32 %v83, %v502
    %504 = vmatmul.bf16.gmra.mxu0 %v337
    %v505 = vpop.f32.mrf.mxu0
    %v506 = vadd.f32 %v83, %v505
    %v507 = vpop.f32.mrf.mxu0
    %v508 = vadd.f32 %v83, %v507
    %509 = vmatmul.bf16.gmra.mxu0 %v340
    %v510 = vpop.f32.mrf.mxu0
    %v511 = vadd.f32 %v83, %v510
    %v512 = vpop.f32.mrf.mxu0
    %v513 = vadd.f32 %v83, %v512
    %514 = vdwg.mxu0
    %v515 = vxor.u32 %v356, 2147483648
    %v516 = vxor.u32 %v358, 2147483648
    %v517 = vxor.u32 %v361, 2147483648
    %v518 = vxor.u32 %v363, 2147483648
    %v519 = vxor.u32 %v366, 2147483648
    %v520 = vxor.u32 %v368, 2147483648
    %v521 = vxor.u32 %v371, 2147483648
    %v522 = vxor.u32 %v373, 2147483648
    %v523 = vxor.u32 %v376, 2147483648
    %v524 = vxor.u32 %v378, 2147483648
    %v525 = vxor.u32 %v381, 2147483648
    %v526 = vxor.u32 %v383, 2147483648
    %v527 = vxor.u32 %v386, 2147483648
    %v528 = vxor.u32 %v388, 2147483648
    %v529 = vxor.u32 %v391, 2147483648
    %v530 = vxor.u32 %v393, 2147483648
    %v531 = vxor.u32 %v396, 2147483648
    %v532 = vxor.u32 %v398, 2147483648
    %v533 = vxor.u32 %v401, 2147483648
    %v534 = vxor.u32 %v403, 2147483648
    %v535 = vxor.u32 %v406, 2147483648
    %v536 = vxor.u32 %v408, 2147483648
    %v537 = vxor.u32 %v411, 2147483648
    %v538 = vxor.u32 %v413, 2147483648
    %v539 = vxor.u32 %v416, 2147483648
    %v540 = vxor.u32 %v418, 2147483648
    %v541 = vxor.u32 %v421, 2147483648
    %v542 = vxor.u32 %v423, 2147483648
    %v543 = vxor.u32 %v426, 2147483648
    %v544 = vxor.u32 %v428, 2147483648
    %v545 = vxor.u32 %v431, 2147483648
    %v546 = vxor.u32 %v433, 2147483648
    %v547 = vxor.u32 %v436, 2147483648
    %v548 = vxor.u32 %v438, 2147483648
    %v549 = vxor.u32 %v441, 2147483648
    %v550 = vxor.u32 %v443, 2147483648
    %v551 = vxor.u32 %v446, 2147483648
    %v552 = vxor.u32 %v448, 2147483648
    %v553 = vxor.u32 %v451, 2147483648
    %v554 = vxor.u32 %v453, 2147483648
    %v555 = vxor.u32 %v456, 2147483648
    %v556 = vxor.u32 %v458, 2147483648
    %v557 = vxor.u32 %v461, 2147483648
    %v558 = vxor.u32 %v463, 2147483648
    %v559 = vxor.u32 %v466, 2147483648
    %v560 = vxor.u32 %v468, 2147483648
    %v561 = vxor.u32 %v471, 2147483648
    %v562 = vxor.u32 %v473, 2147483648
    %v563 = vxor.u32 %v476, 2147483648
    %v564 = vxor.u32 %v478, 2147483648
    %v565 = vxor.u32 %v481, 2147483648
    %v566 = vxor.u32 %v483, 2147483648
    %v567 = vxor.u32 %v486, 2147483648
    %v568 = vxor.u32 %v488, 2147483648
    %v569 = vxor.u32 %v491, 2147483648
    %v570 = vxor.u32 %v493, 2147483648
    %v571 = vxor.u32 %v496, 2147483648
    %v572 = vxor.u32 %v498, 2147483648
    %v573 = vxor.u32 %v501, 2147483648
    %v574 = vxor.u32 %v503, 2147483648
    %v575 = vxor.u32 %v506, 2147483648
    %v576 = vxor.u32 %v508, 2147483648
    %v577 = vxor.u32 %v511, 2147483648
    %v578 = vxor.u32 %v513, 2147483648
    %v579 = vmul.f32 %v515, 1.442695
    %v580 = vpow.pop %v579
    %v581 = vmul.f32 %v516, 1.442695
    %v582 = vpow.pop %v581
    %v583 = vmul.f32 %v517, 1.442695
    %v584 = vpow.pop %v583
    %v585 = vmul.f32 %v518, 1.442695
    %v586 = vpow.pop %v585
    %v587 = vmul.f32 %v519, 1.442695
    %v588 = vpow.pop %v587
    %v589 = vmul.f32 %v520, 1.442695
    %v590 = vpow.pop %v589
    %v591 = vmul.f32 %v521, 1.442695
    %v592 = vpow.pop %v591
    %v593 = vmul.f32 %v522, 1.442695
    %v594 = vpow.pop %v593
    %v595 = vmul.f32 %v523, 1.442695
    %v596 = vpow.pop %v595
    %v597 = vmul.f32 %v524, 1.442695
    %v598 = vpow.pop %v597
    %v599 = vmul.f32 %v525, 1.442695
    %v600 = vpow.pop %v599
    %v601 = vmul.f32 %v526, 1.442695
    %v602 = vpow.pop %v601
    %v603 = vmul.f32 %v527, 1.442695
    %v604 = vpow.pop %v603
    %v605 = vmul.f32 %v528, 1.442695
    %v606 = vpow.pop %v605
    %v607 = vmul.f32 %v529, 1.442695
    %v608 = vpow.pop %v607
    %v609 = vmul.f32 %v530, 1.442695
    %v610 = vpow.pop %v609
    %v611 = vmul.f32 %v531, 1.442695
    %v612 = vpow.pop %v611
    %v613 = vmul.f32 %v532, 1.442695
    %v614 = vpow.pop %v613
    %v615 = vmul.f32 %v533, 1.442695
    %v616 = vpow.pop %v615
    %v617 = vmul.f32 %v534, 1.442695
    %v618 = vpow.pop %v617
    %v619 = vmul.f32 %v535, 1.442695
    %v620 = vpow.pop %v619
    %v621 = vmul.f32 %v536, 1.442695
    %v622 = vpow.pop %v621
    %v623 = vmul.f32 %v537, 1.442695
    %v624 = vpow.pop %v623
    %v625 = vmul.f32 %v538, 1.442695
    %v626 = vpow.pop %v625
    %v627 = vmul.f32 %v539, 1.442695
    %v628 = vpow.pop %v627
    %v629 = vmul.f32 %v540, 1.442695
    %v630 = vpow.pop %v629
    %v631 = vmul.f32 %v541, 1.442695
    %v632 = vpow.pop %v631
    %v633 = vmul.f32 %v542, 1.442695
    %v634 = vpow.pop %v633
    %v635 = vmul.f32 %v543, 1.442695
    %v636 = vpow.pop %v635
    %v637 = vmul.f32 %v544, 1.442695
    %v638 = vpow.pop %v637
    %v639 = vmul.f32 %v545, 1.442695
    %v640 = vpow.pop %v639
    %v641 = vmul.f32 %v546, 1.442695
    %v642 = vpow.pop %v641
    %v643 = vmul.f32 %v547, 1.442695
    %v644 = vpow.pop %v643
    %v645 = vmul.f32 %v548, 1.442695
    %v646 = vpow.pop %v645
    %v647 = vmul.f32 %v549, 1.442695
    %v648 = vpow.pop %v647
    %v649 = vmul.f32 %v550, 1.442695
    %v650 = vpow.pop %v649
    %v651 = vmul.f32 %v551, 1.442695
    %v652 = vpow.pop %v651
    %v653 = vmul.f32 %v552, 1.442695
    %v654 = vpow.pop %v653
    %v655 = vmul.f32 %v553, 1.442695
    %v656 = vpow.pop %v655
    %v657 = vmul.f32 %v554, 1.442695
    %v658 = vpow.pop %v657
    %v659 = vmul.f32 %v555, 1.442695
    %v660 = vpow.pop %v659
    %v661 = vmul.f32 %v556, 1.442695
    %v662 = vpow.pop %v661
    %v663 = vmul.f32 %v557, 1.442695
    %v664 = vpow.pop %v663
    %v665 = vmul.f32 %v558, 1.442695
    %v666 = vpow.pop %v665
    %v667 = vmul.f32 %v559, 1.442695
    %v668 = vpow.pop %v667
    %v669 = vmul.f32 %v560, 1.442695
    %v670 = vpow.pop %v669
    %v671 = vmul.f32 %v561, 1.442695
    %v672 = vpow.pop %v671
    %v673 = vmul.f32 %v562, 1.442695
    %v674 = vpow.pop %v673
    %v675 = vmul.f32 %v563, 1.442695
    %v676 = vpow.pop %v675
    %v677 = vmul.f32 %v564, 1.442695
    %v678 = vpow.pop %v677
    %v679 = vmul.f32 %v565, 1.442695
    %v680 = vpow.pop %v679
    %v681 = vmul.f32 %v566, 1.442695
    %v682 = vpow.pop %v681
    %v683 = vmul.f32 %v567, 1.442695
    %v684 = vpow.pop %v683
    %v685 = vmul.f32 %v568, 1.442695
    %v686 = vpow.pop %v685
    %v687 = vmul.f32 %v569, 1.442695
    %v688 = vpow.pop %v687
    %v689 = vmul.f32 %v570, 1.442695
    %v690 = vpow.pop %v689
    %v691 = vmul.f32 %v571, 1.442695
    %v692 = vpow.pop %v691
    %v693 = vmul.f32 %v572, 1.442695
    %v694 = vpow.pop %v693
    %v695 = vmul.f32 %v573, 1.442695
    %v696 = vpow.pop %v695
    %v697 = vmul.f32 %v574, 1.442695
    %v698 = vpow.pop %v697
    %v699 = vmul.f32 %v575, 1.442695
    %v700 = vpow.pop %v699
    %v701 = vmul.f32 %v576, 1.442695
    %v702 = vpow.pop %v701
    %v703 = vmul.f32 %v577, 1.442695
    %v704 = vpow.pop %v703
    %v705 = vmul.f32 %v578, 1.442695
    %v706 = vpow.pop %v705
    %v707 = vadd.f32 %v580, 1.0
    %v708 = vadd.f32 %v582, 1.0
    %v709 = vadd.f32 %v584, 1.0
    %v710 = vadd.f32 %v586, 1.0
    %v711 = vadd.f32 %v588, 1.0
    %v712 = vadd.f32 %v590, 1.0
    %v713 = vadd.f32 %v592, 1.0
    %v714 = vadd.f32 %v594, 1.0
    %v715 = vadd.f32 %v596, 1.0
    %v716 = vadd.f32 %v598, 1.0
    %v717 = vadd.f32 %v600, 1.0
    %v718 = vadd.f32 %v602, 1.0
    %v719 = vadd.f32 %v604, 1.0
    %v720 = vadd.f32 %v606, 1.0
    %v721 = vadd.f32 %v608, 1.0
    %v722 = vadd.f32 %v610, 1.0
    %v723 = vadd.f32 %v612, 1.0
    %v724 = vadd.f32 %v614, 1.0
    %v725 = vadd.f32 %v616, 1.0
    %v726 = vadd.f32 %v618, 1.0
    %v727 = vadd.f32 %v620, 1.0
    %v728 = vadd.f32 %v622, 1.0
    %v729 = vadd.f32 %v624, 1.0
    %v730 = vadd.f32 %v626, 1.0
    %v731 = vadd.f32 %v628, 1.0
    %v732 = vadd.f32 %v630, 1.0
    %v733 = vadd.f32 %v632, 1.0
    %v734 = vadd.f32 %v634, 1.0
    %v735 = vadd.f32 %v636, 1.0
    %v736 = vadd.f32 %v638, 1.0
    %v737 = vadd.f32 %v640, 1.0
    %v738 = vadd.f32 %v642, 1.0
    %v739 = vadd.f32 %v644, 1.0
    %v740 = vadd.f32 %v646, 1.0
    %v741 = vadd.f32 %v648, 1.0
    %v742 = vadd.f32 %v650, 1.0
    %v743 = vadd.f32 %v652, 1.0
    %v744 = vadd.f32 %v654, 1.0
    %v745 = vadd.f32 %v656, 1.0
    %v746 = vadd.f32 %v658, 1.0
    %v747 = vadd.f32 %v660, 1.0
    %v748 = vadd.f32 %v662, 1.0
    %v749 = vadd.f32 %v664, 1.0
    %v750 = vadd.f32 %v666, 1.0
    %v751 = vadd.f32 %v668, 1.0
    %v752 = vadd.f32 %v670, 1.0
    %v753 = vadd.f32 %v672, 1.0
    %v754 = vadd.f32 %v674, 1.0
    %v755 = vadd.f32 %v676, 1.0
    %v756 = vadd.f32 %v678, 1.0
    %v757 = vadd.f32 %v680, 1.0
    %v758 = vadd.f32 %v682, 1.0
    %v759 = vadd.f32 %v684, 1.0
    %v760 = vadd.f32 %v686, 1.0
    %v761 = vadd.f32 %v688, 1.0
    %v762 = vadd.f32 %v690, 1.0
    %v763 = vadd.f32 %v692, 1.0
    %v764 = vadd.f32 %v694, 1.0
    %v765 = vadd.f32 %v696, 1.0
    %v766 = vadd.f32 %v698, 1.0
    %v767 = vadd.f32 %v700, 1.0
    %v768 = vadd.f32 %v702, 1.0
    %v769 = vadd.f32 %v704, 1.0
    %v770 = vadd.f32 %v706, 1.0
    %v771 = vrcp.pop %v707
    %v772 = vmul.f32 %v707, %v771
    %v773 = vsub.f32 1.0, %v772
    %v774 = vmul.f32 %v771, %v773
    %v775 = vadd.f32 %v771, %v774
    %vm776 = vweird.f32 %v707
    %vm777 = vweird.f32 %v771
    %vm778 = vmor %vm776, %vm777
    %v779 = vsel %vm778, %v771, %v775
    %v780 = vand.u32 2147483647, %v707
    %vm781 = vcmp.eq.f32.partialorder %v780, 8.507059e+37
    %v782 = vand.u32 %v707, 2147483648
    %v783 = vor.u32 1.1754944e-38, %v782
    %v784 = vsel %vm781, %v783, %v779
    %v785 = vmul.f32 1.0, %v784
    %v786 = vrcp.pop %v708
    %v787 = vmul.f32 %v708, %v786
    %v788 = vsub.f32 1.0, %v787
    %v789 = vmul.f32 %v786, %v788
    %v790 = vadd.f32 %v786, %v789
    %vm791 = vweird.f32 %v708
    %vm792 = vweird.f32 %v786
    %vm793 = vmor %vm791, %vm792
    %v794 = vsel %vm793, %v786, %v790
    %v795 = vand.u32 2147483647, %v708
    %vm796 = vcmp.eq.f32.partialorder %v795, 8.507059e+37
    %v797 = vand.u32 %v708, 2147483648
    %v798 = vor.u32 1.1754944e-38, %v797
    %v799 = vsel %vm796, %v798, %v794
    %v800 = vmul.f32 1.0, %v799
    %v801 = vrcp.pop %v709
    %v802 = vmul.f32 %v709, %v801
    %v803 = vsub.f32 1.0, %v802
    %v804 = vmul.f32 %v801, %v803
    %v805 = vadd.f32 %v801, %v804
    %vm806 = vweird.f32 %v709
    %vm807 = vweird.f32 %v801
    %vm808 = vmor %vm806, %vm807
    %v809 = vsel %vm808, %v801, %v805
    %v810 = vand.u32 2147483647, %v709
    %vm811 = vcmp.eq.f32.partialorder %v810, 8.507059e+37
    %v812 = vand.u32 %v709, 2147483648
    %v813 = vor.u32 1.1754944e-38, %v812
    %v814 = vsel %vm811, %v813, %v809
    %v815 = vmul.f32 1.0, %v814
    %v816 = vrcp.pop %v710
    %v817 = vmul.f32 %v710, %v816
    %v818 = vsub.f32 1.0, %v817
    %v819 = vmul.f32 %v816, %v818
    %v820 = vadd.f32 %v816, %v819
    %vm821 = vweird.f32 %v710
    %vm822 = vweird.f32 %v816
    %vm823 = vmor %vm821, %vm822
    %v824 = vsel %vm823, %v816, %v820
    %v825 = vand.u32 2147483647, %v710
    %vm826 = vcmp.eq.f32.partialorder %v825, 8.507059e+37
    %v827 = vand.u32 %v710, 2147483648
    %v828 = vor.u32 1.1754944e-38, %v827
    %v829 = vsel %vm826, %v828, %v824
    %v830 = vmul.f32 1.0, %v829
    %v831 = vrcp.pop %v711
    %v832 = vmul.f32 %v711, %v831
    %v833 = vsub.f32 1.0, %v832
    %v834 = vmul.f32 %v831, %v833
    %v835 = vadd.f32 %v831, %v834
    %vm836 = vweird.f32 %v711
    %vm837 = vweird.f32 %v831
    %vm838 = vmor %vm836, %vm837
    %v839 = vsel %vm838, %v831, %v835
    %v840 = vand.u32 2147483647, %v711
    %vm841 = vcmp.eq.f32.partialorder %v840, 8.507059e+37
    %v842 = vand.u32 %v711, 2147483648
    %v843 = vor.u32 1.1754944e-38, %v842
    %v844 = vsel %vm841, %v843, %v839
    %v845 = vmul.f32 1.0, %v844
    %v846 = vrcp.pop %v712
    %v847 = vmul.f32 %v712, %v846
    %v848 = vsub.f32 1.0, %v847
    %v849 = vmul.f32 %v846, %v848
    %v850 = vadd.f32 %v846, %v849
    %vm851 = vweird.f32 %v712
    %vm852 = vweird.f32 %v846
    %vm853 = vmor %vm851, %vm852
    %v854 = vsel %vm853, %v846, %v850
    %v855 = vand.u32 2147483647, %v712
    %vm856 = vcmp.eq.f32.partialorder %v855, 8.507059e+37
    %v857 = vand.u32 %v712, 2147483648
    %v858 = vor.u32 1.1754944e-38, %v857
    %v859 = vsel %vm856, %v858, %v854
    %v860 = vmul.f32 1.0, %v859
    %v861 = vrcp.pop %v713
    %v862 = vmul.f32 %v713, %v861
    %v863 = vsub.f32 1.0, %v862
    %v864 = vmul.f32 %v861, %v863
    %v865 = vadd.f32 %v861, %v864
    %vm866 = vweird.f32 %v713
    %vm867 = vweird.f32 %v861
    %vm868 = vmor %vm866, %vm867
    %v869 = vsel %vm868, %v861, %v865
    %v870 = vand.u32 2147483647, %v713
    %vm871 = vcmp.eq.f32.partialorder %v870, 8.507059e+37
    %v872 = vand.u32 %v713, 2147483648
    %v873 = vor.u32 1.1754944e-38, %v872
    %v874 = vsel %vm871, %v873, %v869
    %v875 = vmul.f32 1.0, %v874
    %v876 = vrcp.pop %v714
    %v877 = vmul.f32 %v714, %v876
    %v878 = vsub.f32 1.0, %v877
    %v879 = vmul.f32 %v876, %v878
    %v880 = vadd.f32 %v876, %v879
    %vm881 = vweird.f32 %v714
    %vm882 = vweird.f32 %v876
    %vm883 = vmor %vm881, %vm882
    %v884 = vsel %vm883, %v876, %v880
    %v885 = vand.u32 2147483647, %v714
    %vm886 = vcmp.eq.f32.partialorder %v885, 8.507059e+37
    %v887 = vand.u32 %v714, 2147483648
    %v888 = vor.u32 1.1754944e-38, %v887
    %v889 = vsel %vm886, %v888, %v884
    %v890 = vmul.f32 1.0, %v889
    %v891 = vrcp.pop %v715
    %v892 = vmul.f32 %v715, %v891
    %v893 = vsub.f32 1.0, %v892
    %v894 = vmul.f32 %v891, %v893
    %v895 = vadd.f32 %v891, %v894
    %vm896 = vweird.f32 %v715
    %vm897 = vweird.f32 %v891
    %vm898 = vmor %vm896, %vm897
    %v899 = vsel %vm898, %v891, %v895
    %v900 = vand.u32 2147483647, %v715
    %vm901 = vcmp.eq.f32.partialorder %v900, 8.507059e+37
    %v902 = vand.u32 %v715, 2147483648
    %v903 = vor.u32 1.1754944e-38, %v902
    %v904 = vsel %vm901, %v903, %v899
    %v905 = vmul.f32 1.0, %v904
    %v906 = vrcp.pop %v716
    %v907 = vmul.f32 %v716, %v906
    %v908 = vsub.f32 1.0, %v907
    %v909 = vmul.f32 %v906, %v908
    %v910 = vadd.f32 %v906, %v909
    %vm911 = vweird.f32 %v716
    %vm912 = vweird.f32 %v906
    %vm913 = vmor %vm911, %vm912
    %v914 = vsel %vm913, %v906, %v910
    %v915 = vand.u32 2147483647, %v716
    %vm916 = vcmp.eq.f32.partialorder %v915, 8.507059e+37
    %v917 = vand.u32 %v716, 2147483648
    %v918 = vor.u32 1.1754944e-38, %v917
    %v919 = vsel %vm916, %v918, %v914
    %v920 = vmul.f32 1.0, %v919
    %v921 = vrcp.pop %v717
    %v922 = vmul.f32 %v717, %v921
    %v923 = vsub.f32 1.0, %v922
    %v924 = vmul.f32 %v921, %v923
    %v925 = vadd.f32 %v921, %v924
    %vm926 = vweird.f32 %v717
    %vm927 = vweird.f32 %v921
    %vm928 = vmor %vm926, %vm927
    %v929 = vsel %vm928, %v921, %v925
    %v930 = vand.u32 2147483647, %v717
    %vm931 = vcmp.eq.f32.partialorder %v930, 8.507059e+37
    %v932 = vand.u32 %v717, 2147483648
    %v933 = vor.u32 1.1754944e-38, %v932
    %v934 = vsel %vm931, %v933, %v929
    %v935 = vmul.f32 1.0, %v934
    %v936 = vrcp.pop %v718
    %v937 = vmul.f32 %v718, %v936
    %v938 = vsub.f32 1.0, %v937
    %v939 = vmul.f32 %v936, %v938
    %v940 = vadd.f32 %v936, %v939
    %vm941 = vweird.f32 %v718
    %vm942 = vweird.f32 %v936
    %vm943 = vmor %vm941, %vm942
    %v944 = vsel %vm943, %v936, %v940
    %v945 = vand.u32 2147483647, %v718
    %vm946 = vcmp.eq.f32.partialorder %v945, 8.507059e+37
    %v947 = vand.u32 %v718, 2147483648
    %v948 = vor.u32 1.1754944e-38, %v947
    %v949 = vsel %vm946, %v948, %v944
    %v950 = vmul.f32 1.0, %v949
    %v951 = vrcp.pop %v719
    %v952 = vmul.f32 %v719, %v951
    %v953 = vsub.f32 1.0, %v952
    %v954 = vmul.f32 %v951, %v953
    %v955 = vadd.f32 %v951, %v954
    %vm956 = vweird.f32 %v719
    %vm957 = vweird.f32 %v951
    %vm958 = vmor %vm956, %vm957
    %v959 = vsel %vm958, %v951, %v955
    %v960 = vand.u32 2147483647, %v719
    %vm961 = vcmp.eq.f32.partialorder %v960, 8.507059e+37
    %v962 = vand.u32 %v719, 2147483648
    %v963 = vor.u32 1.1754944e-38, %v962
    %v964 = vsel %vm961, %v963, %v959
    %v965 = vmul.f32 1.0, %v964
    %v966 = vrcp.pop %v720
    %v967 = vmul.f32 %v720, %v966
    %v968 = vsub.f32 1.0, %v967
    %v969 = vmul.f32 %v966, %v968
    %v970 = vadd.f32 %v966, %v969
    %vm971 = vweird.f32 %v720
    %vm972 = vweird.f32 %v966
    %vm973 = vmor %vm971, %vm972
    %v974 = vsel %vm973, %v966, %v970
    %v975 = vand.u32 2147483647, %v720
    %vm976 = vcmp.eq.f32.partialorder %v975, 8.507059e+37
    %v977 = vand.u32 %v720, 2147483648
    %v978 = vor.u32 1.1754944e-38, %v977
    %v979 = vsel %vm976, %v978, %v974
    %v980 = vmul.f32 1.0, %v979
    %v981 = vrcp.pop %v721
    %v982 = vmul.f32 %v721, %v981
    %v983 = vsub.f32 1.0, %v982
    %v984 = vmul.f32 %v981, %v983
    %v985 = vadd.f32 %v981, %v984
    %vm986 = vweird.f32 %v721
    %vm987 = vweird.f32 %v981
    %vm988 = vmor %vm986, %vm987
    %v989 = vsel %vm988, %v981, %v985
    %v990 = vand.u32 2147483647, %v721
    %vm991 = vcmp.eq.f32.partialorder %v990, 8.507059e+37
    %v992 = vand.u32 %v721, 2147483648
    %v993 = vor.u32 1.1754944e-38, %v992
    %v994 = vsel %vm991, %v993, %v989
    %v995 = vmul.f32 1.0, %v994
    %v996 = vrcp.pop %v722
    %v997 = vmul.f32 %v722, %v996
    %v998 = vsub.f32 1.0, %v997
    %v999 = vmul.f32 %v996, %v998
    %v1000 = vadd.f32 %v996, %v999
    %vm1001 = vweird.f32 %v722
    %vm1002 = vweird.f32 %v996
    %vm1003 = vmor %vm1001, %vm1002
    %v1004 = vsel %vm1003, %v996, %v1000
    %v1005 = vand.u32 2147483647, %v722
    %vm1006 = vcmp.eq.f32.partialorder %v1005, 8.507059e+37
    %v1007 = vand.u32 %v722, 2147483648
    %v1008 = vor.u32 1.1754944e-38, %v1007
    %v1009 = vsel %vm1006, %v1008, %v1004
    %v1010 = vmul.f32 1.0, %v1009
    %v1011 = vrcp.pop %v723
    %v1012 = vmul.f32 %v723, %v1011
    %v1013 = vsub.f32 1.0, %v1012
    %v1014 = vmul.f32 %v1011, %v1013
    %v1015 = vadd.f32 %v1011, %v1014
    %vm1016 = vweird.f32 %v723
    %vm1017 = vweird.f32 %v1011
    %vm1018 = vmor %vm1016, %vm1017
    %v1019 = vsel %vm1018, %v1011, %v1015
    %v1020 = vand.u32 2147483647, %v723
    %vm1021 = vcmp.eq.f32.partialorder %v1020, 8.507059e+37
    %v1022 = vand.u32 %v723, 2147483648
    %v1023 = vor.u32 1.1754944e-38, %v1022
    %v1024 = vsel %vm1021, %v1023, %v1019
    %v1025 = vmul.f32 1.0, %v1024
    %v1026 = vrcp.pop %v724
    %v1027 = vmul.f32 %v724, %v1026
    %v1028 = vsub.f32 1.0, %v1027
    %v1029 = vmul.f32 %v1026, %v1028
    %v1030 = vadd.f32 %v1026, %v1029
    %vm1031 = vweird.f32 %v724
    %vm1032 = vweird.f32 %v1026
    %vm1033 = vmor %vm1031, %vm1032
    %v1034 = vsel %vm1033, %v1026, %v1030
    %v1035 = vand.u32 2147483647, %v724
    %vm1036 = vcmp.eq.f32.partialorder %v1035, 8.507059e+37
    %v1037 = vand.u32 %v724, 2147483648
    %v1038 = vor.u32 1.1754944e-38, %v1037
    %v1039 = vsel %vm1036, %v1038, %v1034
    %v1040 = vmul.f32 1.0, %v1039
    %v1041 = vrcp.pop %v725
    %v1042 = vmul.f32 %v725, %v1041
    %v1043 = vsub.f32 1.0, %v1042
    %v1044 = vmul.f32 %v1041, %v1043
    %v1045 = vadd.f32 %v1041, %v1044
    %vm1046 = vweird.f32 %v725
    %vm1047 = vweird.f32 %v1041
    %vm1048 = vmor %vm1046, %vm1047
    %v1049 = vsel %vm1048, %v1041, %v1045
    %v1050 = vand.u32 2147483647, %v725
    %vm1051 = vcmp.eq.f32.partialorder %v1050, 8.507059e+37
    %v1052 = vand.u32 %v725, 2147483648
    %v1053 = vor.u32 1.1754944e-38, %v1052
    %v1054 = vsel %vm1051, %v1053, %v1049
    %v1055 = vmul.f32 1.0, %v1054
    %v1056 = vrcp.pop %v726
    %v1057 = vmul.f32 %v726, %v1056
    %v1058 = vsub.f32 1.0, %v1057
    %v1059 = vmul.f32 %v1056, %v1058
    %v1060 = vadd.f32 %v1056, %v1059
    %vm1061 = vweird.f32 %v726
    %vm1062 = vweird.f32 %v1056
    %vm1063 = vmor %vm1061, %vm1062
    %v1064 = vsel %vm1063, %v1056, %v1060
    %v1065 = vand.u32 2147483647, %v726
    %vm1066 = vcmp.eq.f32.partialorder %v1065, 8.507059e+37
    %v1067 = vand.u32 %v726, 2147483648
    %v1068 = vor.u32 1.1754944e-38, %v1067
    %v1069 = vsel %vm1066, %v1068, %v1064
    %v1070 = vmul.f32 1.0, %v1069
    %v1071 = vrcp.pop %v727
    %v1072 = vmul.f32 %v727, %v1071
    %v1073 = vsub.f32 1.0, %v1072
    %v1074 = vmul.f32 %v1071, %v1073
    %v1075 = vadd.f32 %v1071, %v1074
    %vm1076 = vweird.f32 %v727
    %vm1077 = vweird.f32 %v1071
    %vm1078 = vmor %vm1076, %vm1077
    %v1079 = vsel %vm1078, %v1071, %v1075
    %v1080 = vand.u32 2147483647, %v727
    %vm1081 = vcmp.eq.f32.partialorder %v1080, 8.507059e+37
    %v1082 = vand.u32 %v727, 2147483648
    %v1083 = vor.u32 1.1754944e-38, %v1082
    %v1084 = vsel %vm1081, %v1083, %v1079
    %v1085 = vmul.f32 1.0, %v1084
    %v1086 = vrcp.pop %v728
    %v1087 = vmul.f32 %v728, %v1086
    %v1088 = vsub.f32 1.0, %v1087
    %v1089 = vmul.f32 %v1086, %v1088
    %v1090 = vadd.f32 %v1086, %v1089
    %vm1091 = vweird.f32 %v728
    %vm1092 = vweird.f32 %v1086
    %vm1093 = vmor %vm1091, %vm1092
    %v1094 = vsel %vm1093, %v1086, %v1090
    %v1095 = vand.u32 2147483647, %v728
    %vm1096 = vcmp.eq.f32.partialorder %v1095, 8.507059e+37
    %v1097 = vand.u32 %v728, 2147483648
    %v1098 = vor.u32 1.1754944e-38, %v1097
    %v1099 = vsel %vm1096, %v1098, %v1094
    %v1100 = vmul.f32 1.0, %v1099
    %v1101 = vrcp.pop %v729
    %v1102 = vmul.f32 %v729, %v1101
    %v1103 = vsub.f32 1.0, %v1102
    %v1104 = vmul.f32 %v1101, %v1103
    %v1105 = vadd.f32 %v1101, %v1104
    %vm1106 = vweird.f32 %v729
    %vm1107 = vweird.f32 %v1101
    %vm1108 = vmor %vm1106, %vm1107
    %v1109 = vsel %vm1108, %v1101, %v1105
    %v1110 = vand.u32 2147483647, %v729
    %vm1111 = vcmp.eq.f32.partialorder %v1110, 8.507059e+37
    %v1112 = vand.u32 %v729, 2147483648
    %v1113 = vor.u32 1.1754944e-38, %v1112
    %v1114 = vsel %vm1111, %v1113, %v1109
    %v1115 = vmul.f32 1.0, %v1114
    %v1116 = vrcp.pop %v730
    %v1117 = vmul.f32 %v730, %v1116
    %v1118 = vsub.f32 1.0, %v1117
    %v1119 = vmul.f32 %v1116, %v1118
    %v1120 = vadd.f32 %v1116, %v1119
    %vm1121 = vweird.f32 %v730
    %vm1122 = vweird.f32 %v1116
    %vm1123 = vmor %vm1121, %vm1122
    %v1124 = vsel %vm1123, %v1116, %v1120
    %v1125 = vand.u32 2147483647, %v730
    %vm1126 = vcmp.eq.f32.partialorder %v1125, 8.507059e+37
    %v1127 = vand.u32 %v730, 2147483648
    %v1128 = vor.u32 1.1754944e-38, %v1127
    %v1129 = vsel %vm1126, %v1128, %v1124
    %v1130 = vmul.f32 1.0, %v1129
    %v1131 = vrcp.pop %v731
    %v1132 = vmul.f32 %v731, %v1131
    %v1133 = vsub.f32 1.0, %v1132
    %v1134 = vmul.f32 %v1131, %v1133
    %v1135 = vadd.f32 %v1131, %v1134
    %vm1136 = vweird.f32 %v731
    %vm1137 = vweird.f32 %v1131
    %vm1138 = vmor %vm1136, %vm1137
    %v1139 = vsel %vm1138, %v1131, %v1135
    %v1140 = vand.u32 2147483647, %v731
    %vm1141 = vcmp.eq.f32.partialorder %v1140, 8.507059e+37
    %v1142 = vand.u32 %v731, 2147483648
    %v1143 = vor.u32 1.1754944e-38, %v1142
    %v1144 = vsel %vm1141, %v1143, %v1139
    %v1145 = vmul.f32 1.0, %v1144
    %v1146 = vrcp.pop %v732
    %v1147 = vmul.f32 %v732, %v1146
    %v1148 = vsub.f32 1.0, %v1147
    %v1149 = vmul.f32 %v1146, %v1148
    %v1150 = vadd.f32 %v1146, %v1149
    %vm1151 = vweird.f32 %v732
    %vm1152 = vweird.f32 %v1146
    %vm1153 = vmor %vm1151, %vm1152
    %v1154 = vsel %vm1153, %v1146, %v1150
    %v1155 = vand.u32 2147483647, %v732
    %vm1156 = vcmp.eq.f32.partialorder %v1155, 8.507059e+37
    %v1157 = vand.u32 %v732, 2147483648
    %v1158 = vor.u32 1.1754944e-38, %v1157
    %v1159 = vsel %vm1156, %v1158, %v1154
    %v1160 = vmul.f32 1.0, %v1159
    %v1161 = vrcp.pop %v733
    %v1162 = vmul.f32 %v733, %v1161
    %v1163 = vsub.f32 1.0, %v1162
    %v1164 = vmul.f32 %v1161, %v1163
    %v1165 = vadd.f32 %v1161, %v1164
    %vm1166 = vweird.f32 %v733
    %vm1167 = vweird.f32 %v1161
    %vm1168 = vmor %vm1166, %vm1167
    %v1169 = vsel %vm1168, %v1161, %v1165
    %v1170 = vand.u32 2147483647, %v733
    %vm1171 = vcmp.eq.f32.partialorder %v1170, 8.507059e+37
    %v1172 = vand.u32 %v733, 2147483648
    %v1173 = vor.u32 1.1754944e-38, %v1172
    %v1174 = vsel %vm1171, %v1173, %v1169
    %v1175 = vmul.f32 1.0, %v1174
    %v1176 = vrcp.pop %v734
    %v1177 = vmul.f32 %v734, %v1176
    %v1178 = vsub.f32 1.0, %v1177
    %v1179 = vmul.f32 %v1176, %v1178
    %v1180 = vadd.f32 %v1176, %v1179
    %vm1181 = vweird.f32 %v734
    %vm1182 = vweird.f32 %v1176
    %vm1183 = vmor %vm1181, %vm1182
    %v1184 = vsel %vm1183, %v1176, %v1180
    %v1185 = vand.u32 2147483647, %v734
    %vm1186 = vcmp.eq.f32.partialorder %v1185, 8.507059e+37
    %v1187 = vand.u32 %v734, 2147483648
    %v1188 = vor.u32 1.1754944e-38, %v1187
    %v1189 = vsel %vm1186, %v1188, %v1184
    %v1190 = vmul.f32 1.0, %v1189
    %v1191 = vrcp.pop %v735
    %v1192 = vmul.f32 %v735, %v1191
    %v1193 = vsub.f32 1.0, %v1192
    %v1194 = vmul.f32 %v1191, %v1193
    %v1195 = vadd.f32 %v1191, %v1194
    %vm1196 = vweird.f32 %v735
    %vm1197 = vweird.f32 %v1191
    %vm1198 = vmor %vm1196, %vm1197
    %v1199 = vsel %vm1198, %v1191, %v1195
    %v1200 = vand.u32 2147483647, %v735
    %vm1201 = vcmp.eq.f32.partialorder %v1200, 8.507059e+37
    %v1202 = vand.u32 %v735, 2147483648
    %v1203 = vor.u32 1.1754944e-38, %v1202
    %v1204 = vsel %vm1201, %v1203, %v1199
    %v1205 = vmul.f32 1.0, %v1204
    %v1206 = vrcp.pop %v736
    %v1207 = vmul.f32 %v736, %v1206
    %v1208 = vsub.f32 1.0, %v1207
    %v1209 = vmul.f32 %v1206, %v1208
    %v1210 = vadd.f32 %v1206, %v1209
    %vm1211 = vweird.f32 %v736
    %vm1212 = vweird.f32 %v1206
    %vm1213 = vmor %vm1211, %vm1212
    %v1214 = vsel %vm1213, %v1206, %v1210
    %v1215 = vand.u32 2147483647, %v736
    %vm1216 = vcmp.eq.f32.partialorder %v1215, 8.507059e+37
    %v1217 = vand.u32 %v736, 2147483648
    %v1218 = vor.u32 1.1754944e-38, %v1217
    %v1219 = vsel %vm1216, %v1218, %v1214
    %v1220 = vmul.f32 1.0, %v1219
    %v1221 = vrcp.pop %v737
    %v1222 = vmul.f32 %v737, %v1221
    %v1223 = vsub.f32 1.0, %v1222
    %v1224 = vmul.f32 %v1221, %v1223
    %v1225 = vadd.f32 %v1221, %v1224
    %vm1226 = vweird.f32 %v737
    %vm1227 = vweird.f32 %v1221
    %vm1228 = vmor %vm1226, %vm1227
    %v1229 = vsel %vm1228, %v1221, %v1225
    %v1230 = vand.u32 2147483647, %v737
    %vm1231 = vcmp.eq.f32.partialorder %v1230, 8.507059e+37
    %v1232 = vand.u32 %v737, 2147483648
    %v1233 = vor.u32 1.1754944e-38, %v1232
    %v1234 = vsel %vm1231, %v1233, %v1229
    %v1235 = vmul.f32 1.0, %v1234
    %v1236 = vrcp.pop %v738
    %v1237 = vmul.f32 %v738, %v1236
    %v1238 = vsub.f32 1.0, %v1237
    %v1239 = vmul.f32 %v1236, %v1238
    %v1240 = vadd.f32 %v1236, %v1239
    %vm1241 = vweird.f32 %v738
    %vm1242 = vweird.f32 %v1236
    %vm1243 = vmor %vm1241, %vm1242
    %v1244 = vsel %vm1243, %v1236, %v1240
    %v1245 = vand.u32 2147483647, %v738
    %vm1246 = vcmp.eq.f32.partialorder %v1245, 8.507059e+37
    %v1247 = vand.u32 %v738, 2147483648
    %v1248 = vor.u32 1.1754944e-38, %v1247
    %v1249 = vsel %vm1246, %v1248, %v1244
    %v1250 = vmul.f32 1.0, %v1249
    %v1251 = vrcp.pop %v739
    %v1252 = vmul.f32 %v739, %v1251
    %v1253 = vsub.f32 1.0, %v1252
    %v1254 = vmul.f32 %v1251, %v1253
    %v1255 = vadd.f32 %v1251, %v1254
    %vm1256 = vweird.f32 %v739
    %vm1257 = vweird.f32 %v1251
    %vm1258 = vmor %vm1256, %vm1257
    %v1259 = vsel %vm1258, %v1251, %v1255
    %v1260 = vand.u32 2147483647, %v739
    %vm1261 = vcmp.eq.f32.partialorder %v1260, 8.507059e+37
    %v1262 = vand.u32 %v739, 2147483648
    %v1263 = vor.u32 1.1754944e-38, %v1262
    %v1264 = vsel %vm1261, %v1263, %v1259
    %v1265 = vmul.f32 1.0, %v1264
    %v1266 = vrcp.pop %v740
    %v1267 = vmul.f32 %v740, %v1266
    %v1268 = vsub.f32 1.0, %v1267
    %v1269 = vmul.f32 %v1266, %v1268
    %v1270 = vadd.f32 %v1266, %v1269
    %vm1271 = vweird.f32 %v740
    %vm1272 = vweird.f32 %v1266
    %vm1273 = vmor %vm1271, %vm1272
    %v1274 = vsel %vm1273, %v1266, %v1270
    %v1275 = vand.u32 2147483647, %v740
    %vm1276 = vcmp.eq.f32.partialorder %v1275, 8.507059e+37
    %v1277 = vand.u32 %v740, 2147483648
    %v1278 = vor.u32 1.1754944e-38, %v1277
    %v1279 = vsel %vm1276, %v1278, %v1274
    %v1280 = vmul.f32 1.0, %v1279
    %v1281 = vrcp.pop %v741
    %v1282 = vmul.f32 %v741, %v1281
    %v1283 = vsub.f32 1.0, %v1282
    %v1284 = vmul.f32 %v1281, %v1283
    %v1285 = vadd.f32 %v1281, %v1284
    %vm1286 = vweird.f32 %v741
    %vm1287 = vweird.f32 %v1281
    %vm1288 = vmor %vm1286, %vm1287
    %v1289 = vsel %vm1288, %v1281, %v1285
    %v1290 = vand.u32 2147483647, %v741
    %vm1291 = vcmp.eq.f32.partialorder %v1290, 8.507059e+37
    %v1292 = vand.u32 %v741, 2147483648
    %v1293 = vor.u32 1.1754944e-38, %v1292
    %v1294 = vsel %vm1291, %v1293, %v1289
    %v1295 = vmul.f32 1.0, %v1294
    %v1296 = vrcp.pop %v742
    %v1297 = vmul.f32 %v742, %v1296
    %v1298 = vsub.f32 1.0, %v1297
    %v1299 = vmul.f32 %v1296, %v1298
    %v1300 = vadd.f32 %v1296, %v1299
    %vm1301 = vweird.f32 %v742
    %vm1302 = vweird.f32 %v1296
    %vm1303 = vmor %vm1301, %vm1302
    %v1304 = vsel %vm1303, %v1296, %v1300
    %v1305 = vand.u32 2147483647, %v742
    %vm1306 = vcmp.eq.f32.partialorder %v1305, 8.507059e+37
    %v1307 = vand.u32 %v742, 2147483648
    %v1308 = vor.u32 1.1754944e-38, %v1307
    %v1309 = vsel %vm1306, %v1308, %v1304
    %v1310 = vmul.f32 1.0, %v1309
    %v1311 = vrcp.pop %v743
    %v1312 = vmul.f32 %v743, %v1311
    %v1313 = vsub.f32 1.0, %v1312
    %v1314 = vmul.f32 %v1311, %v1313
    %v1315 = vadd.f32 %v1311, %v1314
    %vm1316 = vweird.f32 %v743
    %vm1317 = vweird.f32 %v1311
    %vm1318 = vmor %vm1316, %vm1317
    %v1319 = vsel %vm1318, %v1311, %v1315
    %v1320 = vand.u32 2147483647, %v743
    %vm1321 = vcmp.eq.f32.partialorder %v1320, 8.507059e+37
    %v1322 = vand.u32 %v743, 2147483648
    %v1323 = vor.u32 1.1754944e-38, %v1322
    %v1324 = vsel %vm1321, %v1323, %v1319
    %v1325 = vmul.f32 1.0, %v1324
    %v1326 = vrcp.pop %v744
    %v1327 = vmul.f32 %v744, %v1326
    %v1328 = vsub.f32 1.0, %v1327
    %v1329 = vmul.f32 %v1326, %v1328
    %v1330 = vadd.f32 %v1326, %v1329
    %vm1331 = vweird.f32 %v744
    %vm1332 = vweird.f32 %v1326
    %vm1333 = vmor %vm1331, %vm1332
    %v1334 = vsel %vm1333, %v1326, %v1330
    %v1335 = vand.u32 2147483647, %v744
    %vm1336 = vcmp.eq.f32.partialorder %v1335, 8.507059e+37
    %v1337 = vand.u32 %v744, 2147483648
    %v1338 = vor.u32 1.1754944e-38, %v1337
    %v1339 = vsel %vm1336, %v1338, %v1334
    %v1340 = vmul.f32 1.0, %v1339
    %v1341 = vrcp.pop %v745
    %v1342 = vmul.f32 %v745, %v1341
    %v1343 = vsub.f32 1.0, %v1342
    %v1344 = vmul.f32 %v1341, %v1343
    %v1345 = vadd.f32 %v1341, %v1344
    %vm1346 = vweird.f32 %v745
    %vm1347 = vweird.f32 %v1341
    %vm1348 = vmor %vm1346, %vm1347
    %v1349 = vsel %vm1348, %v1341, %v1345
    %v1350 = vand.u32 2147483647, %v745
    %vm1351 = vcmp.eq.f32.partialorder %v1350, 8.507059e+37
    %v1352 = vand.u32 %v745, 2147483648
    %v1353 = vor.u32 1.1754944e-38, %v1352
    %v1354 = vsel %vm1351, %v1353, %v1349
    %v1355 = vmul.f32 1.0, %v1354
    %v1356 = vrcp.pop %v746
    %v1357 = vmul.f32 %v746, %v1356
    %v1358 = vsub.f32 1.0, %v1357
    %v1359 = vmul.f32 %v1356, %v1358
    %v1360 = vadd.f32 %v1356, %v1359
    %vm1361 = vweird.f32 %v746
    %vm1362 = vweird.f32 %v1356
    %vm1363 = vmor %vm1361, %vm1362
    %v1364 = vsel %vm1363, %v1356, %v1360
    %v1365 = vand.u32 2147483647, %v746
    %vm1366 = vcmp.eq.f32.partialorder %v1365, 8.507059e+37
    %v1367 = vand.u32 %v746, 2147483648
    %v1368 = vor.u32 1.1754944e-38, %v1367
    %v1369 = vsel %vm1366, %v1368, %v1364
    %v1370 = vmul.f32 1.0, %v1369
    %v1371 = vrcp.pop %v747
    %v1372 = vmul.f32 %v747, %v1371
    %v1373 = vsub.f32 1.0, %v1372
    %v1374 = vmul.f32 %v1371, %v1373
    %v1375 = vadd.f32 %v1371, %v1374
    %vm1376 = vweird.f32 %v747
    %vm1377 = vweird.f32 %v1371
    %vm1378 = vmor %vm1376, %vm1377
    %v1379 = vsel %vm1378, %v1371, %v1375
    %v1380 = vand.u32 2147483647, %v747
    %vm1381 = vcmp.eq.f32.partialorder %v1380, 8.507059e+37
    %v1382 = vand.u32 %v747, 2147483648
    %v1383 = vor.u32 1.1754944e-38, %v1382
    %v1384 = vsel %vm1381, %v1383, %v1379
    %v1385 = vmul.f32 1.0, %v1384
    %v1386 = vrcp.pop %v748
    %v1387 = vmul.f32 %v748, %v1386
    %v1388 = vsub.f32 1.0, %v1387
    %v1389 = vmul.f32 %v1386, %v1388
    %v1390 = vadd.f32 %v1386, %v1389
    %vm1391 = vweird.f32 %v748
    %vm1392 = vweird.f32 %v1386
    %vm1393 = vmor %vm1391, %vm1392
    %v1394 = vsel %vm1393, %v1386, %v1390
    %v1395 = vand.u32 2147483647, %v748
    %vm1396 = vcmp.eq.f32.partialorder %v1395, 8.507059e+37
    %v1397 = vand.u32 %v748, 2147483648
    %v1398 = vor.u32 1.1754944e-38, %v1397
    %v1399 = vsel %vm1396, %v1398, %v1394
    %v1400 = vmul.f32 1.0, %v1399
    %v1401 = vrcp.pop %v749
    %v1402 = vmul.f32 %v749, %v1401
    %v1403 = vsub.f32 1.0, %v1402
    %v1404 = vmul.f32 %v1401, %v1403
    %v1405 = vadd.f32 %v1401, %v1404
    %vm1406 = vweird.f32 %v749
    %vm1407 = vweird.f32 %v1401
    %vm1408 = vmor %vm1406, %vm1407
    %v1409 = vsel %vm1408, %v1401, %v1405
    %v1410 = vand.u32 2147483647, %v749
    %vm1411 = vcmp.eq.f32.partialorder %v1410, 8.507059e+37
    %v1412 = vand.u32 %v749, 2147483648
    %v1413 = vor.u32 1.1754944e-38, %v1412
    %v1414 = vsel %vm1411, %v1413, %v1409
    %v1415 = vmul.f32 1.0, %v1414
    %v1416 = vrcp.pop %v750
    %v1417 = vmul.f32 %v750, %v1416
    %v1418 = vsub.f32 1.0, %v1417
    %v1419 = vmul.f32 %v1416, %v1418
    %v1420 = vadd.f32 %v1416, %v1419
    %vm1421 = vweird.f32 %v750
    %vm1422 = vweird.f32 %v1416
    %vm1423 = vmor %vm1421, %vm1422
    %v1424 = vsel %vm1423, %v1416, %v1420
    %v1425 = vand.u32 2147483647, %v750
    %vm1426 = vcmp.eq.f32.partialorder %v1425, 8.507059e+37
    %v1427 = vand.u32 %v750, 2147483648
    %v1428 = vor.u32 1.1754944e-38, %v1427
    %v1429 = vsel %vm1426, %v1428, %v1424
    %v1430 = vmul.f32 1.0, %v1429
    %v1431 = vrcp.pop %v751
    %v1432 = vmul.f32 %v751, %v1431
    %v1433 = vsub.f32 1.0, %v1432
    %v1434 = vmul.f32 %v1431, %v1433
    %v1435 = vadd.f32 %v1431, %v1434
    %vm1436 = vweird.f32 %v751
    %vm1437 = vweird.f32 %v1431
    %vm1438 = vmor %vm1436, %vm1437
    %v1439 = vsel %vm1438, %v1431, %v1435
    %v1440 = vand.u32 2147483647, %v751
    %vm1441 = vcmp.eq.f32.partialorder %v1440, 8.507059e+37
    %v1442 = vand.u32 %v751, 2147483648
    %v1443 = vor.u32 1.1754944e-38, %v1442
    %v1444 = vsel %vm1441, %v1443, %v1439
    %v1445 = vmul.f32 1.0, %v1444
    %v1446 = vrcp.pop %v752
    %v1447 = vmul.f32 %v752, %v1446
    %v1448 = vsub.f32 1.0, %v1447
    %v1449 = vmul.f32 %v1446, %v1448
    %v1450 = vadd.f32 %v1446, %v1449
    %vm1451 = vweird.f32 %v752
    %vm1452 = vweird.f32 %v1446
    %vm1453 = vmor %vm1451, %vm1452
    %v1454 = vsel %vm1453, %v1446, %v1450
    %v1455 = vand.u32 2147483647, %v752
    %vm1456 = vcmp.eq.f32.partialorder %v1455, 8.507059e+37
    %v1457 = vand.u32 %v752, 2147483648
    %v1458 = vor.u32 1.1754944e-38, %v1457
    %v1459 = vsel %vm1456, %v1458, %v1454
    %v1460 = vmul.f32 1.0, %v1459
    %v1461 = vrcp.pop %v753
    %v1462 = vmul.f32 %v753, %v1461
    %v1463 = vsub.f32 1.0, %v1462
    %v1464 = vmul.f32 %v1461, %v1463
    %v1465 = vadd.f32 %v1461, %v1464
    %vm1466 = vweird.f32 %v753
    %vm1467 = vweird.f32 %v1461
    %vm1468 = vmor %vm1466, %vm1467
    %v1469 = vsel %vm1468, %v1461, %v1465
    %v1470 = vand.u32 2147483647, %v753
    %vm1471 = vcmp.eq.f32.partialorder %v1470, 8.507059e+37
    %v1472 = vand.u32 %v753, 2147483648
    %v1473 = vor.u32 1.1754944e-38, %v1472
    %v1474 = vsel %vm1471, %v1473, %v1469
    %v1475 = vmul.f32 1.0, %v1474
    %v1476 = vrcp.pop %v754
    %v1477 = vmul.f32 %v754, %v1476
    %v1478 = vsub.f32 1.0, %v1477
    %v1479 = vmul.f32 %v1476, %v1478
    %v1480 = vadd.f32 %v1476, %v1479
    %vm1481 = vweird.f32 %v754
    %vm1482 = vweird.f32 %v1476
    %vm1483 = vmor %vm1481, %vm1482
    %v1484 = vsel %vm1483, %v1476, %v1480
    %v1485 = vand.u32 2147483647, %v754
    %vm1486 = vcmp.eq.f32.partialorder %v1485, 8.507059e+37
    %v1487 = vand.u32 %v754, 2147483648
    %v1488 = vor.u32 1.1754944e-38, %v1487
    %v1489 = vsel %vm1486, %v1488, %v1484
    %v1490 = vmul.f32 1.0, %v1489
    %v1491 = vrcp.pop %v755
    %v1492 = vmul.f32 %v755, %v1491
    %v1493 = vsub.f32 1.0, %v1492
    %v1494 = vmul.f32 %v1491, %v1493
    %v1495 = vadd.f32 %v1491, %v1494
    %vm1496 = vweird.f32 %v755
    %vm1497 = vweird.f32 %v1491
    %vm1498 = vmor %vm1496, %vm1497
    %v1499 = vsel %vm1498, %v1491, %v1495
    %v1500 = vand.u32 2147483647, %v755
    %vm1501 = vcmp.eq.f32.partialorder %v1500, 8.507059e+37
    %v1502 = vand.u32 %v755, 2147483648
    %v1503 = vor.u32 1.1754944e-38, %v1502
    %v1504 = vsel %vm1501, %v1503, %v1499
    %v1505 = vmul.f32 1.0, %v1504
    %v1506 = vrcp.pop %v756
    %v1507 = vmul.f32 %v756, %v1506
    %v1508 = vsub.f32 1.0, %v1507
    %v1509 = vmul.f32 %v1506, %v1508
    %v1510 = vadd.f32 %v1506, %v1509
    %vm1511 = vweird.f32 %v756
    %vm1512 = vweird.f32 %v1506
    %vm1513 = vmor %vm1511, %vm1512
    %v1514 = vsel %vm1513, %v1506, %v1510
    %v1515 = vand.u32 2147483647, %v756
    %vm1516 = vcmp.eq.f32.partialorder %v1515, 8.507059e+37
    %v1517 = vand.u32 %v756, 2147483648
    %v1518 = vor.u32 1.1754944e-38, %v1517
    %v1519 = vsel %vm1516, %v1518, %v1514
    %v1520 = vmul.f32 1.0, %v1519
    %v1521 = vrcp.pop %v757
    %v1522 = vmul.f32 %v757, %v1521
    %v1523 = vsub.f32 1.0, %v1522
    %v1524 = vmul.f32 %v1521, %v1523
    %v1525 = vadd.f32 %v1521, %v1524
    %vm1526 = vweird.f32 %v757
    %vm1527 = vweird.f32 %v1521
    %vm1528 = vmor %vm1526, %vm1527
    %v1529 = vsel %vm1528, %v1521, %v1525
    %v1530 = vand.u32 2147483647, %v757
    %vm1531 = vcmp.eq.f32.partialorder %v1530, 8.507059e+37
    %v1532 = vand.u32 %v757, 2147483648
    %v1533 = vor.u32 1.1754944e-38, %v1532
    %v1534 = vsel %vm1531, %v1533, %v1529
    %v1535 = vmul.f32 1.0, %v1534
    %v1536 = vrcp.pop %v758
    %v1537 = vmul.f32 %v758, %v1536
    %v1538 = vsub.f32 1.0, %v1537
    %v1539 = vmul.f32 %v1536, %v1538
    %v1540 = vadd.f32 %v1536, %v1539
    %vm1541 = vweird.f32 %v758
    %vm1542 = vweird.f32 %v1536
    %vm1543 = vmor %vm1541, %vm1542
    %v1544 = vsel %vm1543, %v1536, %v1540
    %v1545 = vand.u32 2147483647, %v758
    %vm1546 = vcmp.eq.f32.partialorder %v1545, 8.507059e+37
    %v1547 = vand.u32 %v758, 2147483648
    %v1548 = vor.u32 1.1754944e-38, %v1547
    %v1549 = vsel %vm1546, %v1548, %v1544
    %v1550 = vmul.f32 1.0, %v1549
    %v1551 = vrcp.pop %v759
    %v1552 = vmul.f32 %v759, %v1551
    %v1553 = vsub.f32 1.0, %v1552
    %v1554 = vmul.f32 %v1551, %v1553
    %v1555 = vadd.f32 %v1551, %v1554
    %vm1556 = vweird.f32 %v759
    %vm1557 = vweird.f32 %v1551
    %vm1558 = vmor %vm1556, %vm1557
    %v1559 = vsel %vm1558, %v1551, %v1555
    %v1560 = vand.u32 2147483647, %v759
    %vm1561 = vcmp.eq.f32.partialorder %v1560, 8.507059e+37
    %v1562 = vand.u32 %v759, 2147483648
    %v1563 = vor.u32 1.1754944e-38, %v1562
    %v1564 = vsel %vm1561, %v1563, %v1559
    %v1565 = vmul.f32 1.0, %v1564
    %v1566 = vrcp.pop %v760
    %v1567 = vmul.f32 %v760, %v1566
    %v1568 = vsub.f32 1.0, %v1567
    %v1569 = vmul.f32 %v1566, %v1568
    %v1570 = vadd.f32 %v1566, %v1569
    %vm1571 = vweird.f32 %v760
    %vm1572 = vweird.f32 %v1566
    %vm1573 = vmor %vm1571, %vm1572
    %v1574 = vsel %vm1573, %v1566, %v1570
    %v1575 = vand.u32 2147483647, %v760
    %vm1576 = vcmp.eq.f32.partialorder %v1575, 8.507059e+37
    %v1577 = vand.u32 %v760, 2147483648
    %v1578 = vor.u32 1.1754944e-38, %v1577
    %v1579 = vsel %vm1576, %v1578, %v1574
    %v1580 = vmul.f32 1.0, %v1579
    %v1581 = vrcp.pop %v761
    %v1582 = vmul.f32 %v761, %v1581
    %v1583 = vsub.f32 1.0, %v1582
    %v1584 = vmul.f32 %v1581, %v1583
    %v1585 = vadd.f32 %v1581, %v1584
    %vm1586 = vweird.f32 %v761
    %vm1587 = vweird.f32 %v1581
    %vm1588 = vmor %vm1586, %vm1587
    %v1589 = vsel %vm1588, %v1581, %v1585
    %v1590 = vand.u32 2147483647, %v761
    %vm1591 = vcmp.eq.f32.partialorder %v1590, 8.507059e+37
    %v1592 = vand.u32 %v761, 2147483648
    %v1593 = vor.u32 1.1754944e-38, %v1592
    %v1594 = vsel %vm1591, %v1593, %v1589
    %v1595 = vmul.f32 1.0, %v1594
    %v1596 = vrcp.pop %v762
    %v1597 = vmul.f32 %v762, %v1596
    %v1598 = vsub.f32 1.0, %v1597
    %v1599 = vmul.f32 %v1596, %v1598
    %v1600 = vadd.f32 %v1596, %v1599
    %vm1601 = vweird.f32 %v762
    %vm1602 = vweird.f32 %v1596
    %vm1603 = vmor %vm1601, %vm1602
    %v1604 = vsel %vm1603, %v1596, %v1600
    %v1605 = vand.u32 2147483647, %v762
    %vm1606 = vcmp.eq.f32.partialorder %v1605, 8.507059e+37
    %v1607 = vand.u32 %v762, 2147483648
    %v1608 = vor.u32 1.1754944e-38, %v1607
    %v1609 = vsel %vm1606, %v1608, %v1604
    %v1610 = vmul.f32 1.0, %v1609
    %v1611 = vrcp.pop %v763
    %v1612 = vmul.f32 %v763, %v1611
    %v1613 = vsub.f32 1.0, %v1612
    %v1614 = vmul.f32 %v1611, %v1613
    %v1615 = vadd.f32 %v1611, %v1614
    %vm1616 = vweird.f32 %v763
    %vm1617 = vweird.f32 %v1611
    %vm1618 = vmor %vm1616, %vm1617
    %v1619 = vsel %vm1618, %v1611, %v1615
    %v1620 = vand.u32 2147483647, %v763
    %vm1621 = vcmp.eq.f32.partialorder %v1620, 8.507059e+37
    %v1622 = vand.u32 %v763, 2147483648
    %v1623 = vor.u32 1.1754944e-38, %v1622
    %v1624 = vsel %vm1621, %v1623, %v1619
    %v1625 = vmul.f32 1.0, %v1624
    %v1626 = vrcp.pop %v764
    %v1627 = vmul.f32 %v764, %v1626
    %v1628 = vsub.f32 1.0, %v1627
    %v1629 = vmul.f32 %v1626, %v1628
    %v1630 = vadd.f32 %v1626, %v1629
    %vm1631 = vweird.f32 %v764
    %vm1632 = vweird.f32 %v1626
    %vm1633 = vmor %vm1631, %vm1632
    %v1634 = vsel %vm1633, %v1626, %v1630
    %v1635 = vand.u32 2147483647, %v764
    %vm1636 = vcmp.eq.f32.partialorder %v1635, 8.507059e+37
    %v1637 = vand.u32 %v764, 2147483648
    %v1638 = vor.u32 1.1754944e-38, %v1637
    %v1639 = vsel %vm1636, %v1638, %v1634
    %v1640 = vmul.f32 1.0, %v1639
    %v1641 = vrcp.pop %v765
    %v1642 = vmul.f32 %v765, %v1641
    %v1643 = vsub.f32 1.0, %v1642
    %v1644 = vmul.f32 %v1641, %v1643
    %v1645 = vadd.f32 %v1641, %v1644
    %vm1646 = vweird.f32 %v765
    %vm1647 = vweird.f32 %v1641
    %vm1648 = vmor %vm1646, %vm1647
    %v1649 = vsel %vm1648, %v1641, %v1645
    %v1650 = vand.u32 2147483647, %v765
    %vm1651 = vcmp.eq.f32.partialorder %v1650, 8.507059e+37
    %v1652 = vand.u32 %v765, 2147483648
    %v1653 = vor.u32 1.1754944e-38, %v1652
    %v1654 = vsel %vm1651, %v1653, %v1649
    %v1655 = vmul.f32 1.0, %v1654
    %v1656 = vrcp.pop %v766
    %v1657 = vmul.f32 %v766, %v1656
    %v1658 = vsub.f32 1.0, %v1657
    %v1659 = vmul.f32 %v1656, %v1658
    %v1660 = vadd.f32 %v1656, %v1659
    %vm1661 = vweird.f32 %v766
    %vm1662 = vweird.f32 %v1656
    %vm1663 = vmor %vm1661, %vm1662
    %v1664 = vsel %vm1663, %v1656, %v1660
    %v1665 = vand.u32 2147483647, %v766
    %vm1666 = vcmp.eq.f32.partialorder %v1665, 8.507059e+37
    %v1667 = vand.u32 %v766, 2147483648
    %v1668 = vor.u32 1.1754944e-38, %v1667
    %v1669 = vsel %vm1666, %v1668, %v1664
    %v1670 = vmul.f32 1.0, %v1669
    %v1671 = vrcp.pop %v767
    %v1672 = vmul.f32 %v767, %v1671
    %v1673 = vsub.f32 1.0, %v1672
    %v1674 = vmul.f32 %v1671, %v1673
    %v1675 = vadd.f32 %v1671, %v1674
    %vm1676 = vweird.f32 %v767
    %vm1677 = vweird.f32 %v1671
    %vm1678 = vmor %vm1676, %vm1677
    %v1679 = vsel %vm1678, %v1671, %v1675
    %v1680 = vand.u32 2147483647, %v767
    %vm1681 = vcmp.eq.f32.partialorder %v1680, 8.507059e+37
    %v1682 = vand.u32 %v767, 2147483648
    %v1683 = vor.u32 1.1754944e-38, %v1682
    %v1684 = vsel %vm1681, %v1683, %v1679
    %v1685 = vmul.f32 1.0, %v1684
    %v1686 = vrcp.pop %v768
    %v1687 = vmul.f32 %v768, %v1686
    %v1688 = vsub.f32 1.0, %v1687
    %v1689 = vmul.f32 %v1686, %v1688
    %v1690 = vadd.f32 %v1686, %v1689
    %vm1691 = vweird.f32 %v768
    %vm1692 = vweird.f32 %v1686
    %vm1693 = vmor %vm1691, %vm1692
    %v1694 = vsel %vm1693, %v1686, %v1690
    %v1695 = vand.u32 2147483647, %v768
    %vm1696 = vcmp.eq.f32.partialorder %v1695, 8.507059e+37
    %v1697 = vand.u32 %v768, 2147483648
    %v1698 = vor.u32 1.1754944e-38, %v1697
    %v1699 = vsel %vm1696, %v1698, %v1694
    %v1700 = vmul.f32 1.0, %v1699
    %v1701 = vrcp.pop %v769
    %v1702 = vmul.f32 %v769, %v1701
    %v1703 = vsub.f32 1.0, %v1702
    %v1704 = vmul.f32 %v1701, %v1703
    %v1705 = vadd.f32 %v1701, %v1704
    %vm1706 = vweird.f32 %v769
    %vm1707 = vweird.f32 %v1701
    %vm1708 = vmor %vm1706, %vm1707
    %v1709 = vsel %vm1708, %v1701, %v1705
    %v1710 = vand.u32 2147483647, %v769
    %vm1711 = vcmp.eq.f32.partialorder %v1710, 8.507059e+37
    %v1712 = vand.u32 %v769, 2147483648
    %v1713 = vor.u32 1.1754944e-38, %v1712
    %v1714 = vsel %vm1711, %v1713, %v1709
    %v1715 = vmul.f32 1.0, %v1714
    %v1716 = vrcp.pop %v770
    %v1717 = vmul.f32 %v770, %v1716
    %v1718 = vsub.f32 1.0, %v1717
    %v1719 = vmul.f32 %v1716, %v1718
    %v1720 = vadd.f32 %v1716, %v1719
    %vm1721 = vweird.f32 %v770
    %vm1722 = vweird.f32 %v1716
    %vm1723 = vmor %vm1721, %vm1722
    %v1724 = vsel %vm1723, %v1716, %v1720
    %v1725 = vand.u32 2147483647, %v770
    %vm1726 = vcmp.eq.f32.partialorder %v1725, 8.507059e+37
    %v1727 = vand.u32 %v770, 2147483648
    %v1728 = vor.u32 1.1754944e-38, %v1727
    %v1729 = vsel %vm1726, %v1728, %v1724
    %v1730 = vmul.f32 1.0, %v1729
    %v1731 = vmul.f32 %v356, %v785
    %v1732 = vmul.f32 %v358, %v800
    %v1733 = vmul.f32 %v361, %v815
    %v1734 = vmul.f32 %v363, %v830
    %v1735 = vmul.f32 %v366, %v845
    %v1736 = vmul.f32 %v368, %v860
    %v1737 = vmul.f32 %v371, %v875
    %v1738 = vmul.f32 %v373, %v890
    %v1739 = vmul.f32 %v376, %v905
    %v1740 = vmul.f32 %v378, %v920
    %v1741 = vmul.f32 %v381, %v935
    %v1742 = vmul.f32 %v383, %v950
    %v1743 = vmul.f32 %v386, %v965
    %v1744 = vmul.f32 %v388, %v980
    %v1745 = vmul.f32 %v391, %v995
    %v1746 = vmul.f32 %v393, %v1010
    %v1747 = vmul.f32 %v396, %v1025
    %v1748 = vmul.f32 %v398, %v1040
    %v1749 = vmul.f32 %v401, %v1055
    %v1750 = vmul.f32 %v403, %v1070
    %v1751 = vmul.f32 %v406, %v1085
    %v1752 = vmul.f32 %v408, %v1100
    %v1753 = vmul.f32 %v411, %v1115
    %v1754 = vmul.f32 %v413, %v1130
    %v1755 = vmul.f32 %v416, %v1145
    %v1756 = vmul.f32 %v418, %v1160
    %v1757 = vmul.f32 %v421, %v1175
    %v1758 = vmul.f32 %v423, %v1190
    %v1759 = vmul.f32 %v426, %v1205
    %v1760 = vmul.f32 %v428, %v1220
    %v1761 = vmul.f32 %v431, %v1235
    %v1762 = vmul.f32 %v433, %v1250
    %v1763 = vmul.f32 %v436, %v1265
    %v1764 = vmul.f32 %v438, %v1280
    %v1765 = vmul.f32 %v441, %v1295
    %v1766 = vmul.f32 %v443, %v1310
    %v1767 = vmul.f32 %v446, %v1325
    %v1768 = vmul.f32 %v448, %v1340
    %v1769 = vmul.f32 %v451, %v1355
    %v1770 = vmul.f32 %v453, %v1370
    %v1771 = vmul.f32 %v456, %v1385
    %v1772 = vmul.f32 %v458, %v1400
    %v1773 = vmul.f32 %v461, %v1415
    %v1774 = vmul.f32 %v463, %v1430
    %v1775 = vmul.f32 %v466, %v1445
    %v1776 = vmul.f32 %v468, %v1460
    %v1777 = vmul.f32 %v471, %v1475
    %v1778 = vmul.f32 %v473, %v1490
    %v1779 = vmul.f32 %v476, %v1505
    %v1780 = vmul.f32 %v478, %v1520
    %v1781 = vmul.f32 %v481, %v1535
    %v1782 = vmul.f32 %v483, %v1550
    %v1783 = vmul.f32 %v486, %v1565
    %v1784 = vmul.f32 %v488, %v1580
    %v1785 = vmul.f32 %v491, %v1595
    %v1786 = vmul.f32 %v493, %v1610
    %v1787 = vmul.f32 %v496, %v1625
    %v1788 = vmul.f32 %v498, %v1640
    %v1789 = vmul.f32 %v501, %v1655
    %v1790 = vmul.f32 %v503, %v1670
    %v1791 = vmul.f32 %v506, %v1685
    %v1792 = vmul.f32 %v508, %v1700
    %v1793 = vmul.f32 %v511, %v1715
    %v1794 = vmul.f32 %v513, %v1730
    %v1795 = vpack.c.bf16 %v1731, %v1731
    %v1796 = vpack.c.bf16 %v1732, %v1732
    %v1797 = vpack.c.bf16 %v1733, %v1733
    %v1798 = vpack.c.bf16 %v1734, %v1734
    %v1799 = vpack.c.bf16 %v1735, %v1735
    %v1800 = vpack.c.bf16 %v1736, %v1736
    %v1801 = vpack.c.bf16 %v1737, %v1737
    %v1802 = vpack.c.bf16 %v1738, %v1738
    %v1803 = vpack.c.bf16 %v1739, %v1739
    %v1804 = vpack.c.bf16 %v1740, %v1740
    %v1805 = vpack.c.bf16 %v1741, %v1741
    %v1806 = vpack.c.bf16 %v1742, %v1742
    %v1807 = vpack.c.bf16 %v1743, %v1743
    %v1808 = vpack.c.bf16 %v1744, %v1744
    %v1809 = vpack.c.bf16 %v1745, %v1745
    %v1810 = vpack.c.bf16 %v1746, %v1746
    %v1811 = vpack.c.bf16 %v1747, %v1747
    %v1812 = vpack.c.bf16 %v1748, %v1748
    %v1813 = vpack.c.bf16 %v1749, %v1749
    %v1814 = vpack.c.bf16 %v1750, %v1750
    %v1815 = vpack.c.bf16 %v1751, %v1751
    %v1816 = vpack.c.bf16 %v1752, %v1752
    %v1817 = vpack.c.bf16 %v1753, %v1753
    %v1818 = vpack.c.bf16 %v1754, %v1754
    %v1819 = vpack.c.bf16 %v1755, %v1755
    %v1820 = vpack.c.bf16 %v1756, %v1756
    %v1821 = vpack.c.bf16 %v1757, %v1757
    %v1822 = vpack.c.bf16 %v1758, %v1758
    %v1823 = vpack.c.bf16 %v1759, %v1759
    %v1824 = vpack.c.bf16 %v1760, %v1760
    %v1825 = vpack.c.bf16 %v1761, %v1761
    %v1826 = vpack.c.bf16 %v1762, %v1762
    %v1827 = vpack.c.bf16 %v1763, %v1763
    %v1828 = vpack.c.bf16 %v1764, %v1764
    %v1829 = vpack.c.bf16 %v1765, %v1765
    %v1830 = vpack.c.bf16 %v1766, %v1766
    %v1831 = vpack.c.bf16 %v1767, %v1767
    %v1832 = vpack.c.bf16 %v1768, %v1768
    %v1833 = vpack.c.bf16 %v1769, %v1769
    %v1834 = vpack.c.bf16 %v1770, %v1770
    %v1835 = vpack.c.bf16 %v1771, %v1771
    %v1836 = vpack.c.bf16 %v1772, %v1772
    %v1837 = vpack.c.bf16 %v1773, %v1773
    %v1838 = vpack.c.bf16 %v1774, %v1774
    %v1839 = vpack.c.bf16 %v1775, %v1775
    %v1840 = vpack.c.bf16 %v1776, %v1776
    %v1841 = vpack.c.bf16 %v1777, %v1777
    %v1842 = vpack.c.bf16 %v1778, %v1778
    %v1843 = vpack.c.bf16 %v1779, %v1779
    %v1844 = vpack.c.bf16 %v1780, %v1780
    %v1845 = vpack.c.bf16 %v1781, %v1781
    %v1846 = vpack.c.bf16 %v1782, %v1782
    %v1847 = vpack.c.bf16 %v1783, %v1783
    %v1848 = vpack.c.bf16 %v1784, %v1784
    %v1849 = vpack.c.bf16 %v1785, %v1785
    %v1850 = vpack.c.bf16 %v1786, %v1786
    %v1851 = vpack.c.bf16 %v1787, %v1787
    %v1852 = vpack.c.bf16 %v1788, %v1788
    %v1853 = vpack.c.bf16 %v1789, %v1789
    %v1854 = vpack.c.bf16 %v1790, %v1790
    %v1855 = vpack.c.bf16 %v1791, %v1791
    %v1856 = vpack.c.bf16 %v1792, %v1792
    %v1857 = vpack.c.bf16 %v1793, %v1793
    %v1858 = vpack.c.bf16 %v1794, %v1794
    %1859 = vst [vmem:[#allocation2] sm:$0xf] %v1795
    %1860 = vst [vmem:[#allocation2 + $0x4] sm:$0xf] %v1796
    %1861 = vst [vmem:[#allocation2 + $0x8] sm:$0xf] %v1797
    %1862 = vst [vmem:[#allocation2 + $0xc] sm:$0xf] %v1798
    %1863 = vst [vmem:[#allocation2 + $0x10] sm:$0xf] %v1799
    %1864 = vst [vmem:[#allocation2 + $0x14] sm:$0xf] %v1800
    %1865 = vst [vmem:[#allocation2 + $0x18] sm:$0xf] %v1801
    %1866 = vst [vmem:[#allocation2 + $0x1c] sm:$0xf] %v1802
    %1867 = vst [vmem:[#allocation2 + $0x20] sm:$0xf] %v1803
    %1868 = vst [vmem:[#allocation2 + $0x24] sm:$0xf] %v1804
    %1869 = vst [vmem:[#allocation2 + $0x28] sm:$0xf] %v1805
    %1870 = vst [vmem:[#allocation2 + $0x2c] sm:$0xf] %v1806
    %1871 = vst [vmem:[#allocation2 + $0x30] sm:$0xf] %v1807
    %1872 = vst [vmem:[#allocation2 + $0x34] sm:$0xf] %v1808
    %1873 = vst [vmem:[#allocation2 + $0x38] sm:$0xf] %v1809
    %1874 = vst [vmem:[#allocation2 + $0x3c] sm:$0xf] %v1810
    %1875 = vst [vmem:[#allocation2 + $0x40] sm:$0xf] %v1811
    %1876 = vst [vmem:[#allocation2 + $0x44] sm:$0xf] %v1812
    %1877 = vst [vmem:[#allocation2 + $0x48] sm:$0xf] %v1813
    %1878 = vst [vmem:[#allocation2 + $0x4c] sm:$0xf] %v1814
    %1879 = vst [vmem:[#allocation2 + $0x50] sm:$0xf] %v1815
    %1880 = vst [vmem:[#allocation2 + $0x54] sm:$0xf] %v1816
    %1881 = vst [vmem:[#allocation2 + $0x58] sm:$0xf] %v1817
    %1882 = vst [vmem:[#allocation2 + $0x5c] sm:$0xf] %v1818
    %1883 = vst [vmem:[#allocation2 + $0x60] sm:$0xf] %v1819
    %1884 = vst [vmem:[#allocation2 + $0x64] sm:$0xf] %v1820
    %1885 = vst [vmem:[#allocation2 + $0x68] sm:$0xf] %v1821
    %1886 = vst [vmem:[#allocation2 + $0x6c] sm:$0xf] %v1822
    %1887 = vst [vmem:[#allocation2 + $0x70] sm:$0xf] %v1823
    %1888 = vst [vmem:[#allocation2 + $0x74] sm:$0xf] %v1824
    %1889 = vst [vmem:[#allocation2 + $0x78] sm:$0xf] %v1825
    %1890 = vst [vmem:[#allocation2 + $0x7c] sm:$0xf] %v1826
    %1891 = vst [vmem:[#allocation2 + $0x80] sm:$0xf] %v1827
    %1892 = vst [vmem:[#allocation2 + $0x84] sm:$0xf] %v1828
    %1893 = vst [vmem:[#allocation2 + $0x88] sm:$0xf] %v1829
    %1894 = vst [vmem:[#allocation2 + $0x8c] sm:$0xf] %v1830
    %1895 = vst [vmem:[#allocation2 + $0x90] sm:$0xf] %v1831
    %1896 = vst [vmem:[#allocation2 + $0x94] sm:$0xf] %v1832
    %1897 = vst [vmem:[#allocation2 + $0x98] sm:$0xf] %v1833
    %1898 = vst [vmem:[#allocation2 + $0x9c] sm:$0xf] %v1834
    %1899 = vst [vmem:[#allocation2 + $0xa0] sm:$0xf] %v1835
    %1900 = vst [vmem:[#allocation2 + $0xa4] sm:$0xf] %v1836
    %1901 = vst [vmem:[#allocation2 + $0xa8] sm:$0xf] %v1837
    %1902 = vst [vmem:[#allocation2 + $0xac] sm:$0xf] %v1838
    %1903 = vst [vmem:[#allocation2 + $0xb0] sm:$0xf] %v1839
    %1904 = vst [vmem:[#allocation2 + $0xb4] sm:$0xf] %v1840
    %1905 = vst [vmem:[#allocation2 + $0xb8] sm:$0xf] %v1841
    %1906 = vst [vmem:[#allocation2 + $0xbc] sm:$0xf] %v1842
    %1907 = vst [vmem:[#allocation2 + $0xc0] sm:$0xf] %v1843
    %1908 = vst [vmem:[#allocation2 + $0xc4] sm:$0xf] %v1844
    %1909 = vst [vmem:[#allocation2 + $0xc8] sm:$0xf] %v1845
    %1910 = vst [vmem:[#allocation2 + $0xcc] sm:$0xf] %v1846
    %1911 = vst [vmem:[#allocation2 + $0xd0] sm:$0xf] %v1847
    %1912 = vst [vmem:[#allocation2 + $0xd4] sm:$0xf] %v1848
    %1913 = vst [vmem:[#allocation2 + $0xd8] sm:$0xf] %v1849
    %1914 = vst [vmem:[#allocation2 + $0xdc] sm:$0xf] %v1850
    %1915 = vst [vmem:[#allocation2 + $0xe0] sm:$0xf] %v1851
    %1916 = vst [vmem:[#allocation2 + $0xe4] sm:$0xf] %v1852
    %1917 = vst [vmem:[#allocation2 + $0xe8] sm:$0xf] %v1853
    %1918 = vst [vmem:[#allocation2 + $0xec] sm:$0xf] %v1854
    %1919 = vst [vmem:[#allocation2 + $0xf0] sm:$0xf] %v1855
    %1920 = vst [vmem:[#allocation2 + $0xf4] sm:$0xf] %v1856
    %1921 = vst [vmem:[#allocation2 + $0xf8] sm:$0xf] %v1857
    %1922 = vst [vmem:[#allocation2 + $0xfc] sm:$0xf] %v1858
    // Predicated region
    $region14: #{tpu_custom_call.1} parent=1 // pred_check
      _
    $region15: #{tpu_custom_call.1} parent=1 // pred_check_branch
      %1924 = sbr.rel (0) target = $region17
    $region16: #{tpu_custom_call.1} parent=1 // pred_region
      %1926 = vsyncadd [#allocation3], 0
      %s1927 = sshll.u32 [#allocation2], 4
      %s1928 = int_to_ptr.vmem [resolvable:$true] %s1927
      %s1929 = sshll.u32 %s3, 4
      %s1930 = int_to_ptr.hbm [resolvable:$true] %s1929
      %1935 = dma.vmem_to_hbm [thread:$0]  %s1928, 4096, %s1930, [#allocation3], 64, 64, 4
    $region17: #{tpu_custom_call.1} parent=1 // pred_fallthru
      _
    // Predicated region
    $region18: #{tpu_custom_call.1} parent=1 // pred_check
      _
    $region19: #{tpu_custom_call.1} parent=1 // pred_check_branch
      %1937 = sbr.rel (0) target = $region21
    $region20: #{tpu_custom_call.1} parent=1 // pred_region
      %1939 = dma.done [#allocation3], 4096
    $region21: #{tpu_custom_call.1} parent=1 // pred_fallthru
      _
    %1940 = vsyncpa [#allocation3], 1

</llo_original>
